<compile_context>
chip_gen: v7x
topology: tpu7x:2x2x1
jax: 0.10.0
libtpu: 0.0.40
codegen_flags: <defaults>
</compile_context>

<pallas_src>
import functools

import jax
import jax.numpy as jnp
from jax.experimental import pallas as pl
from jax.experimental.pallas import tpu as pltpu


def _round_up(x, m):
    return (x + m - 1) // m * m


# ----------------------------------------------------------------------------
# Kernels
# ----------------------------------------------------------------------------
def _tail_layers(h, w2_ref, w3_ref, w4_ref, w5_ref, b_ref, offs, widths):
    """Bias+ReLU of layer 1 followed by layers 2..5 (all lane-dense, padded)."""
    o1, o2, o3, o4, o5 = offs
    d1p, d2p, d3p, d4p, d5p = widths
    # Dropout(p=0.5) in eval mode is the identity between Linear and ReLU.
    h = jnp.maximum(h + b_ref[:, o1:o1 + d1p], 0.0)
    h = jnp.dot(h.astype(jnp.bfloat16), w2_ref[...],
                preferred_element_type=jnp.float32)
    h = jnp.maximum(h + b_ref[:, o2:o2 + d2p], 0.0)
    h = jnp.dot(h.astype(jnp.bfloat16), w3_ref[...],
                preferred_element_type=jnp.float32)
    h = jnp.maximum(h + b_ref[:, o3:o3 + d3p], 0.0)
    h = jnp.dot(h.astype(jnp.bfloat16), w4_ref[...],
                preferred_element_type=jnp.float32)
    h = jnp.maximum(h + b_ref[:, o4:o4 + d4p], 0.0)
    h = jnp.dot(h.astype(jnp.bfloat16), w5_ref[...],
                preferred_element_type=jnp.float32)
    return h + b_ref[:, o5:o5 + d5p]


def _mlp_fused_kernel(x_ref, w1_ref, w2_ref, w3_ref, w4_ref, w5_ref, b_ref,
                      o_ref, *, offs, widths):
    """Grid = (batch_tiles,). Whole layer-1 reduction in one dot (nk == 1)."""
    h = jnp.dot(x_ref[...].astype(jnp.bfloat16), w1_ref[...],
                preferred_element_type=jnp.float32)
    o_ref[...] = _tail_layers(h, w2_ref, w3_ref, w4_ref, w5_ref,
                              b_ref, offs, widths).astype(o_ref.dtype)


def _mlp_ktiled_kernel(x_ref, w1_ref, w2_ref, w3_ref, w4_ref, w5_ref, b_ref,
                       o_ref, acc_ref, *, offs, widths):
    """Grid = (batch_tiles, k_tiles); k streams W1 when it doesn't fit VMEM."""
    k = pl.program_id(1)

    @pl.when(k == 0)
    def _init():
        acc_ref[...] = jnp.zeros_like(acc_ref)

    acc_ref[...] += jnp.dot(x_ref[...].astype(jnp.bfloat16), w1_ref[...],
                            preferred_element_type=jnp.float32)

    @pl.when(k == pl.num_programs(1) - 1)
    def _finalize():
        o_ref[...] = _tail_layers(acc_ref[...], w2_ref, w3_ref, w4_ref, w5_ref,
                                  b_ref, offs, widths).astype(o_ref.dtype)


# ----------------------------------------------------------------------------
# Tile selection (VMEM-budget driven)
# ----------------------------------------------------------------------------
def _choose_tiles(B, F_pad, dpad, budget, single_buffer):
    d1p, d2p, d3p, d4p, d5p = dpad[1:]
    buf = 1 if single_buffer else 2
    # Resident tail: W2..W5 (bf16) + packed biases (f32).
    resident = buf * 2 * (d1p * d2p + d2p * d3p + d3p * d4p + d4p * d5p)
    resident += buf * 4 * (d1p + d2p + d3p + d4p + d5p)

    tb_cap = _round_up(B, 8)
    cands = [c for c in (512, 256, 128, 64, 32, 16, 8)
             if c <= tb_cap and (c <= 128 or B >= 2 * c)]   # keep >= 2 batch tiles
    if tb_cap <= 128 and tb_cap not in cands:
        cands.append(tb_cap)                                # exact small-batch tile
    cands = sorted(set(cands), reverse=True)

    # Preferred: fused layer-1 (nk == 1), W1 resident, largest TB first.
    for TB in cands:
        if TB < min(128, tb_cap):
            break                                           # don't shrink M just to stay fused
        need = (resident
                + buf * 2 * F_pad * d1p      # W1 bf16, resident across batch tiles
                + 2 * 4 * TB * F_pad         # x tile f32, double-buffered
                + 2 * 4 * TB * d5p           # out tile f32, double-buffered
                + 4 * 4 * TB * d1p)          # tail temporaries headroom
        if need <= budget:
            return TB, F_pad, 1, True

    # Fallback: K-tiled layer 1 (largest TK that fits).
    for TB in cands:
        for TK in (4096, 2048, 1024, 512, 256, 128):
            if TK > F_pad or F_pad % TK:
                continue
            need = (resident
                    + 2 * 2 * TK * d1p       # W1 K-tile bf16, double-buffered
                    + 2 * 4 * TB * TK        # x tile f32, double-buffered
                    + 2 * 4 * TB * d5p       # out tile
                    + 4 * TB * d1p           # f32 accumulator scratch
                    + 4 * 4 * TB * d1p)      # temporaries headroom
            if need <= budget:
                return TB, TK, F_pad // TK, False

    # Nothing fits the estimate: smallest tiles, let Mosaic try.
    return cands[-1], 128, F_pad // 128, False


# ----------------------------------------------------------------------------
# Wrapper
# ----------------------------------------------------------------------------
def hist_discriminator(x_nchw, params):
    """x_nchw: (B, C, H, W) float32.  params: list of (W, b), W stored (in, out)."""
    B = x_nchw.shape[0]
    x_flat = x_nchw.reshape(B, -1)            # keep f32; cast to bf16 in-kernel
    F = x_flat.shape[1]
    if F < 64:
        raise ValueError("input_features must be >= 64 so that F // 64 >= 1")
    dims = (F, F // 2, F // 4, F // 16, F // 64, 1)
    F_pad = _round_up(F, 128)
    dpad = (F_pad,) + tuple(_round_up(d, 128) for d in dims[1:])
    widths = dpad[1:]

    # Per-generation VMEM budget (v5e/v6e: ~102 MiB, v7x: ~51 MiB).
    try:
        vmem_cap = int(pltpu.get_tpu_info().vmem_capacity_bytes)
    except Exception:
        vmem_cap = 64 << 20
    budget = max(int(vmem_cap * 0.8), 16 << 20)

    single_buffer = hasattr(pl, "Buffered")
    TB, TK, nk, fused = _choose_tiles(B, F_pad, dpad, budget, single_buffer)

    # Pad batch and feature dims.
    B_pad = _round_up(B, TB)
    if (B_pad, F_pad) != (B, F):
        x_flat = jnp.pad(x_flat, ((0, B_pad - B), (0, F_pad - F)))
    nb = B_pad // TB

    # Zero-padded bf16 weights (lane-dense in/out dims).
    ws = []
    for i, (W, _) in enumerate(params):
        Wp = jnp.zeros((dpad[i], dpad[i + 1]), jnp.bfloat16)
        Wp = Wp.at[:dims[i], :dims[i + 1]].set(W.astype(jnp.bfloat16))
        ws.append(Wp)

    # Five biases packed into one lane-aligned f32 row -> one DMA.
    offs = tuple(int(sum(dpad[1:1 + i])) for i in range(5))
    total_b = int(sum(dpad[1:]))
    b_all = jnp.zeros((1, total_b), jnp.float32)
    for (_, b), off in zip(params, offs):
        b_all = b_all.at[0, off:off + b.shape[0]].set(b.astype(jnp.float32))

    def build(use_single_buffer):
        def res_spec(shape, idx):
            """Constant-index block: single-buffer when supported."""
            if use_single_buffer:
                try:
                    return pl.BlockSpec(shape, idx, pipeline_mode=pl.Buffered(1))
                except TypeError:
                    pass
            return pl.BlockSpec(shape, idx)

        if fused:
            grid = (nb,)
            idx_b = lambda i: (i, 0)
            idx_0 = lambda i: (0, 0)
            in_specs = [
                pl.BlockSpec((TB, F_pad), idx_b),                 # x tile (f32)
                res_spec((F_pad, widths[0]), idx_0),              # W1 (resident)
                res_spec((widths[0], widths[1]), idx_0),          # W2
                res_spec((widths[1], widths[2]), idx_0),          # W3
                res_spec((widths[2], widths[3]), idx_0),          # W4
                res_spec((widths[3], widths[4]), idx_0),          # W5
                res_spec((1, total_b), idx_0),                    # packed biases
            ]
            out_spec = pl.BlockSpec((TB, widths[4]), idx_b)
            kernel = functools.partial(_mlp_fused_kernel, offs=offs, widths=widths)
            scratch = []
            sem = ("parallel",)
        else:
            grid = (nb, nk)
            in_specs = [
                pl.BlockSpec((TB, TK), lambda i, k: (i, k)),            # x K-tile
                pl.BlockSpec((TK, widths[0]), lambda i, k: (k, 0)),     # W1 K-tile
                res_spec((widths[0], widths[1]), lambda i, k: (0, 0)),  # W2
                res_spec((widths[1], widths[2]), lambda i, k: (0, 0)),  # W3
                res_spec((widths[2], widths[3]), lambda i, k: (0, 0)),  # W4
                res_spec((widths[3], widths[4]), lambda i, k: (0, 0)),  # W5
                res_spec((1, total_b), lambda i, k: (0, 0)),            # biases
            ]
            out_spec = pl.BlockSpec((TB, widths[4]), lambda i, k: (i, 0))
            kernel = functools.partial(_mlp_ktiled_kernel, offs=offs, widths=widths)
            scratch = [pltpu.VMEM((TB, widths[0]), jnp.float32)]
            sem = ("parallel", "arbitrary")

        return pl.pallas_call(
            kernel,
            out_shape=jax.ShapeDtypeStruct((B_pad, widths[4]), jnp.float32),
            grid=grid,
            in_specs=in_specs,
            out_specs=out_spec,
            scratch_shapes=scratch,
            compiler_params=pltpu.CompilerParams(
                dimension_semantics=sem,
                vmem_limit_bytes=int(budget)),
        )

    try:
        out = build(single_buffer)(x_flat, *ws, b_all)
    except Exception:
        if not single_buffer:
            raise
        out = build(False)(x_flat, *ws, b_all)   # retry without Buffered(1)

    return out[:B, :1]


# ----------------------------------------------------------------------------
# Params init + plain-JAX reference
# ----------------------------------------------------------------------------
def init_params(key, input_features):
    """Deterministic init of the 5 Linear layers (weights stored as (in, out))."""
    dims = [input_features,
            input_features // 2,
            input_features // 4,
            input_features // 16,
            input_features // 64,
            1]
    params = []
    for i in range(5):
        key, kw, kb = jax.random.split(key, 3)
        bound = 1.0 / jnp.sqrt(dims[i])
        W = jax.random.uniform(kw, (dims[i], dims[i + 1]),
                               minval=-bound, maxval=bound, dtype=jnp.float32)
        b = jax.random.uniform(kb, (dims[i + 1],),
                               minval=-bound, maxval=bound, dtype=jnp.float32)
        params.append((W, b))
    return params


def reference_forward(x_nchw, params):
    """Plain-JAX reference with the same bf16-weight / f32-accumulate math
    (intentional deviation from a pure-f32 PyTorch forward)."""
    h = x_nchw.reshape(x_nchw.shape[0], -1)
    for i, (W, b) in enumerate(params):
        h = jnp.dot(h.astype(jnp.bfloat16), W.astype(jnp.bfloat16),
                    preferred_element_type=jnp.float32) + b.astype(jnp.float32)
        if i < len(params) - 1:
            h = jnp.maximum(h, 0.0)   # Dropout(eval) is identity
    return h


if __name__ == "__main__":
    key = jax.random.PRNGKey(0)

    # Small input consistent with the module: B=2, C=4, H=W=8 -> 256 features
    # -> layer widths 256 / 128 / 64 / 16 / 4 / 1.
    B, C, H, W = 2, 4, 8, 8
    input_features = C * H * W

    key, kx, kp = jax.random.split(key, 3)
    x = jax.random.normal(kx, (B, C, H, W), dtype=jnp.float32)
    params = init_params(kp, input_features)

    y = jax.block_until_ready(hist_discriminator(x, params))
    y_ref = reference_forward(x, params)

    assert y.shape == (B, 1)
    assert jnp.allclose(y, y_ref, atol=2e-3, rtol=2e-3), "mismatch vs reference"

    print("KERNEL_OK")
</pallas_src>

<mosaic_0001>
module attributes {stable_mosaic.version = 11 : i64} {
  func.func @_mlp_fused_kernel(%arg0: i32, %arg1: memref<8x256xf32, #tpu.memory_space<vmem>>, %arg2: memref<256x128xbf16, #tpu.memory_space<vmem>>, %arg3: memref<128x128xbf16, #tpu.memory_space<vmem>>, %arg4: memref<128x128xbf16, #tpu.memory_space<vmem>>, %arg5: memref<128x128xbf16, #tpu.memory_space<vmem>>, %arg6: memref<128x128xbf16, #tpu.memory_space<vmem>>, %arg7: memref<1x640xf32, #tpu.memory_space<vmem>>, %arg8: memref<8x128xf32, #tpu.memory_space<vmem>>) attributes {dimension_semantics = [#tpu.dimension_semantics<parallel>], iteration_bounds = array<i64: 1>, scalar_prefetch = 0 : i64, scratch_operands = 0 : i64, tpu.core_type = #tpu.core_type<tc>, window_params = [{transform_indices = @transform_0, window_bounds = array<i64: 8, 256>}, {pipeline_mode = #tpu.pipeline_mode<synchronous>, transform_indices = @transform_1, window_bounds = array<i64: 256, 128>}, {pipeline_mode = #tpu.pipeline_mode<synchronous>, transform_indices = @transform_2, window_bounds = array<i64: 128, 128>}, {pipeline_mode = #tpu.pipeline_mode<synchronous>, transform_indices = @transform_3, window_bounds = array<i64: 128, 128>}, {pipeline_mode = #tpu.pipeline_mode<synchronous>, transform_indices = @transform_4, window_bounds = array<i64: 128, 128>}, {pipeline_mode = #tpu.pipeline_mode<synchronous>, transform_indices = @transform_5, window_bounds = array<i64: 128, 128>}, {pipeline_mode = #tpu.pipeline_mode<synchronous>, transform_indices = @transform_6, window_bounds = array<i64: 1, 640>}, {transform_indices = @transform_7, window_bounds = array<i64: 8, 128>}]} {
    %c0 = arith.constant 0 : index
    %c0_0 = arith.constant 0 : index
    %0 = vector.load %arg1[%c0, %c0_0] : memref<8x256xf32, #tpu.memory_space<vmem>>, vector<8x256xf32>
    %1 = arith.truncf %0 : vector<8x256xf32> to vector<8x256xbf16>
    %c0_1 = arith.constant 0 : index
    %c0_2 = arith.constant 0 : index
    %2 = vector.load %arg2[%c0_1, %c0_2] : memref<256x128xbf16, #tpu.memory_space<vmem>>, vector<256x128xbf16>
    %cst = arith.constant dense<0.000000e+00> : vector<8x128xf32>
    %3 = tpu.matmul %1, %2, %cst {dimension_numbers = #tpu.dot_dimension_numbers<[1], [0], [0], [1], [0, 0, 1, 1], [], []>} : vector<8x256xbf16>, vector<256x128xbf16>, vector<8x128xf32> -> vector<8x128xf32>
    %c0_3 = arith.constant 0 : index
    %c0_4 = arith.constant 0 : index
    %4 = vector.load %arg7[%c0_3, %c0_4] : memref<1x640xf32, #tpu.memory_space<vmem>>, vector<1x128xf32>
    %5 = vector.broadcast %4 : vector<1x128xf32> to vector<8x128xf32>
    %6 = arith.addf %3, %5 : vector<8x128xf32>
    %cst_5 = arith.constant 0.000000e+00 : f32
    %7 = vector.broadcast %cst_5 : f32 to vector<8x128xf32>
    %8 = arith.maximumf %6, %7 : vector<8x128xf32>
    %9 = arith.truncf %8 : vector<8x128xf32> to vector<8x128xbf16>
    %c0_6 = arith.constant 0 : index
    %c0_7 = arith.constant 0 : index
    %10 = vector.load %arg3[%c0_6, %c0_7] : memref<128x128xbf16, #tpu.memory_space<vmem>>, vector<128x128xbf16>
    %cst_8 = arith.constant dense<0.000000e+00> : vector<8x128xf32>
    %11 = tpu.matmul %9, %10, %cst_8 {dimension_numbers = #tpu.dot_dimension_numbers<[1], [0], [0], [1], [0, 0, 1, 1], [], []>} : vector<8x128xbf16>, vector<128x128xbf16>, vector<8x128xf32> -> vector<8x128xf32>
    %c0_9 = arith.constant 0 : index
    %c128 = arith.constant 128 : index
    %12 = vector.load %arg7[%c0_9, %c128] : memref<1x640xf32, #tpu.memory_space<vmem>>, vector<1x128xf32>
    %13 = vector.broadcast %12 : vector<1x128xf32> to vector<8x128xf32>
    %14 = arith.addf %11, %13 : vector<8x128xf32>
    %cst_10 = arith.constant 0.000000e+00 : f32
    %15 = vector.broadcast %cst_10 : f32 to vector<8x128xf32>
    %16 = arith.maximumf %14, %15 : vector<8x128xf32>
    %17 = arith.truncf %16 : vector<8x128xf32> to vector<8x128xbf16>
    %c0_11 = arith.constant 0 : index
    %c0_12 = arith.constant 0 : index
    %18 = vector.load %arg4[%c0_11, %c0_12] : memref<128x128xbf16, #tpu.memory_space<vmem>>, vector<128x128xbf16>
    %cst_13 = arith.constant dense<0.000000e+00> : vector<8x128xf32>
    %19 = tpu.matmul %17, %18, %cst_13 {dimension_numbers = #tpu.dot_dimension_numbers<[1], [0], [0], [1], [0, 0, 1, 1], [], []>} : vector<8x128xbf16>, vector<128x128xbf16>, vector<8x128xf32> -> vector<8x128xf32>
    %c0_14 = arith.constant 0 : index
    %c256 = arith.constant 256 : index
    %20 = vector.load %arg7[%c0_14, %c256] : memref<1x640xf32, #tpu.memory_space<vmem>>, vector<1x128xf32>
    %21 = vector.broadcast %20 : vector<1x128xf32> to vector<8x128xf32>
    %22 = arith.addf %19, %21 : vector<8x128xf32>
    %cst_15 = arith.constant 0.000000e+00 : f32
    %23 = vector.broadcast %cst_15 : f32 to vector<8x128xf32>
    %24 = arith.maximumf %22, %23 : vector<8x128xf32>
    %25 = arith.truncf %24 : vector<8x128xf32> to vector<8x128xbf16>
    %c0_16 = arith.constant 0 : index
    %c0_17 = arith.constant 0 : index
    %26 = vector.load %arg5[%c0_16, %c0_17] : memref<128x128xbf16, #tpu.memory_space<vmem>>, vector<128x128xbf16>
    %cst_18 = arith.constant dense<0.000000e+00> : vector<8x128xf32>
    %27 = tpu.matmul %25, %26, %cst_18 {dimension_numbers = #tpu.dot_dimension_numbers<[1], [0], [0], [1], [0, 0, 1, 1], [], []>} : vector<8x128xbf16>, vector<128x128xbf16>, vector<8x128xf32> -> vector<8x128xf32>
    %c0_19 = arith.constant 0 : index
    %c384 = arith.constant 384 : index
    %28 = vector.load %arg7[%c0_19, %c384] : memref<1x640xf32, #tpu.memory_space<vmem>>, vector<1x128xf32>
    %29 = vector.broadcast %28 : vector<1x128xf32> to vector<8x128xf32>
    %30 = arith.addf %27, %29 : vector<8x128xf32>
    %cst_20 = arith.constant 0.000000e+00 : f32
    %31 = vector.broadcast %cst_20 : f32 to vector<8x128xf32>
    %32 = arith.maximumf %30, %31 : vector<8x128xf32>
    %33 = arith.truncf %32 : vector<8x128xf32> to vector<8x128xbf16>
    %c0_21 = arith.constant 0 : index
    %c0_22 = arith.constant 0 : index
    %34 = vector.load %arg6[%c0_21, %c0_22] : memref<128x128xbf16, #tpu.memory_space<vmem>>, vector<128x128xbf16>
    %cst_23 = arith.constant dense<0.000000e+00> : vector<8x128xf32>
    %35 = tpu.matmul %33, %34, %cst_23 {dimension_numbers = #tpu.dot_dimension_numbers<[1], [0], [0], [1], [0, 0, 1, 1], [], []>} : vector<8x128xbf16>, vector<128x128xbf16>, vector<8x128xf32> -> vector<8x128xf32>
    %c0_24 = arith.constant 0 : index
    %c512 = arith.constant 512 : index
    %36 = vector.load %arg7[%c0_24, %c512] : memref<1x640xf32, #tpu.memory_space<vmem>>, vector<1x128xf32>
    %37 = vector.broadcast %36 : vector<1x128xf32> to vector<8x128xf32>
    %38 = arith.addf %35, %37 : vector<8x128xf32>
    %c0_25 = arith.constant 0 : index
    %c0_26 = arith.constant 0 : index
    %39 = vector.load %arg8[%c0_25, %c0_26] : memref<8x128xf32, #tpu.memory_space<vmem>>, vector<8x128xf32>
    tpu.vector_store %arg8[%c0_25, %c0_26], %38 {strides = array<i32>} : memref<8x128xf32, #tpu.memory_space<vmem>>, vector<8x128xf32>,
    return
  }
  func.func @transform_0(%arg0: i32) -> (i32, i32) {
    %c0_i32 = arith.constant 0 : i32
    %c0_i32_0 = arith.constant 0 : i32
    return %arg0, %c0_i32 : i32, i32
  }
  func.func @transform_1(%arg0: i32) -> (i32, i32) {
    %c0_i32 = arith.constant 0 : i32
    %c0_i32_0 = arith.constant 0 : i32
    %c0_i32_1 = arith.constant 0 : i32
    return %c0_i32, %c0_i32_0 : i32, i32
  }
  func.func @transform_2(%arg0: i32) -> (i32, i32) {
    %c0_i32 = arith.constant 0 : i32
    %c0_i32_0 = arith.constant 0 : i32
    %c0_i32_1 = arith.constant 0 : i32
    return %c0_i32, %c0_i32_0 : i32, i32
  }
  func.func @transform_3(%arg0: i32) -> (i32, i32) {
    %c0_i32 = arith.constant 0 : i32
    %c0_i32_0 = arith.constant 0 : i32
    %c0_i32_1 = arith.constant 0 : i32
    return %c0_i32, %c0_i32_0 : i32, i32
  }
  func.func @transform_4(%arg0: i32) -> (i32, i32) {
    %c0_i32 = arith.constant 0 : i32
    %c0_i32_0 = arith.constant 0 : i32
    %c0_i32_1 = arith.constant 0 : i32
    return %c0_i32, %c0_i32_0 : i32, i32
  }
  func.func @transform_5(%arg0: i32) -> (i32, i32) {
    %c0_i32 = arith.constant 0 : i32
    %c0_i32_0 = arith.constant 0 : i32
    %c0_i32_1 = arith.constant 0 : i32
    return %c0_i32, %c0_i32_0 : i32, i32
  }
  func.func @transform_6(%arg0: i32) -> (i32, i32) {
    %c0_i32 = arith.constant 0 : i32
    %c0_i32_0 = arith.constant 0 : i32
    %c0_i32_1 = arith.constant 0 : i32
    return %c0_i32, %c0_i32_0 : i32, i32
  }
  func.func @transform_7(%arg0: i32) -> (i32, i32) {
    %c0_i32 = arith.constant 0 : i32
    %c0_i32_0 = arith.constant 0 : i32
    return %arg0, %c0_i32 : i32, i32
  }
}

module attributes {stable_mosaic.version = 11 : i64} {
  func.func @_mlp_fused_kernel(%arg0: i32, %arg1: memref<8x256xf32, #tpu.memory_space<vmem>>, %arg2: memref<256x128xbf16, #tpu.memory_space<vmem>>, %arg3: memref<128x128xbf16, #tpu.memory_space<vmem>>, %arg4: memref<128x128xbf16, #tpu.memory_space<vmem>>, %arg5: memref<128x128xbf16, #tpu.memory_space<vmem>>, %arg6: memref<128x128xbf16, #tpu.memory_space<vmem>>, %arg7: memref<1x640xf32, #tpu.memory_space<vmem>>, %arg8: memref<8x128xf32, #tpu.memory_space<vmem>>) attributes {dimension_semantics = [#tpu.dimension_semantics<parallel>], iteration_bounds = array<i64: 1>, scalar_prefetch = 0 : i64, scratch_operands = 0 : i64, tpu.core_type = #tpu.core_type<tc>, window_params = [{transform_indices = @transform_0, window_bounds = array<i64: 8, 256>}, {pipeline_mode = #tpu.pipeline_mode<synchronous>, transform_indices = @transform_1, window_bounds = array<i64: 256, 128>}, {pipeline_mode = #tpu.pipeline_mode<synchronous>, transform_indices = @transform_2, window_bounds = array<i64: 128, 128>}, {pipeline_mode = #tpu.pipeline_mode<synchronous>, transform_indices = @transform_3, window_bounds = array<i64: 128, 128>}, {pipeline_mode = #tpu.pipeline_mode<synchronous>, transform_indices = @transform_4, window_bounds = array<i64: 128, 128>}, {pipeline_mode = #tpu.pipeline_mode<synchronous>, transform_indices = @transform_5, window_bounds = array<i64: 128, 128>}, {pipeline_mode = #tpu.pipeline_mode<synchronous>, transform_indices = @transform_6, window_bounds = array<i64: 1, 640>}, {transform_indices = @transform_7, window_bounds = array<i64: 8, 128>}]} {
    %c0 = arith.constant 0 : index
    %c0_0 = arith.constant 0 : index
    %0 = vector.load %arg1[%c0, %c0_0] : memref<8x256xf32, #tpu.memory_space<vmem>>, vector<8x256xf32>
    %1 = arith.truncf %0 : vector<8x256xf32> to vector<8x256xbf16>
    %c0_1 = arith.constant 0 : index
    %c0_2 = arith.constant 0 : index
    %2 = vector.load %arg2[%c0_1, %c0_2] : memref<256x128xbf16, #tpu.memory_space<vmem>>, vector<256x128xbf16>
    %cst = arith.constant dense<0.000000e+00> : vector<8x128xf32>
    %3 = tpu.matmul %1, %2, %cst {dimension_numbers = #tpu.dot_dimension_numbers<[1], [0], [0], [1], [0, 0, 1, 1], [], []>} : vector<8x256xbf16>, vector<256x128xbf16>, vector<8x128xf32> -> vector<8x128xf32>
    %c0_3 = arith.constant 0 : index
    %c0_4 = arith.constant 0 : index
    %4 = vector.load %arg7[%c0_3, %c0_4] : memref<1x640xf32, #tpu.memory_space<vmem>>, vector<1x128xf32>
    %5 = vector.broadcast %4 : vector<1x128xf32> to vector<8x128xf32>
    %6 = arith.addf %3, %5 : vector<8x128xf32>
    %cst_5 = arith.constant 0.000000e+00 : f32
    %7 = vector.broadcast %cst_5 : f32 to vector<8x128xf32>
    %8 = arith.maximumf %6, %7 : vector<8x128xf32>
    %9 = arith.truncf %8 : vector<8x128xf32> to vector<8x128xbf16>
    %c0_6 = arith.constant 0 : index
    %c0_7 = arith.constant 0 : index
    %10 = vector.load %arg3[%c0_6, %c0_7] : memref<128x128xbf16, #tpu.memory_space<vmem>>, vector<128x128xbf16>
    %cst_8 = arith.constant dense<0.000000e+00> : vector<8x128xf32>
    %11 = tpu.matmul %9, %10, %cst_8 {dimension_numbers = #tpu.dot_dimension_numbers<[1], [0], [0], [1], [0, 0, 1, 1], [], []>} : vector<8x128xbf16>, vector<128x128xbf16>, vector<8x128xf32> -> vector<8x128xf32>
    %c0_9 = arith.constant 0 : index
    %c128 = arith.constant 128 : index
    %12 = vector.load %arg7[%c0_9, %c128] : memref<1x640xf32, #tpu.memory_space<vmem>>, vector<1x128xf32>
    %13 = vector.broadcast %12 : vector<1x128xf32> to vector<8x128xf32>
    %14 = arith.addf %11, %13 : vector<8x128xf32>
    %cst_10 = arith.constant 0.000000e+00 : f32
    %15 = vector.broadcast %cst_10 : f32 to vector<8x128xf32>
    %16 = arith.maximumf %14, %15 : vector<8x128xf32>
    %17 = arith.truncf %16 : vector<8x128xf32> to vector<8x128xbf16>
    %c0_11 = arith.constant 0 : index
    %c0_12 = arith.constant 0 : index
    %18 = vector.load %arg4[%c0_11, %c0_12] : memref<128x128xbf16, #tpu.memory_space<vmem>>, vector<128x128xbf16>
    %cst_13 = arith.constant dense<0.000000e+00> : vector<8x128xf32>
    %19 = tpu.matmul %17, %18, %cst_13 {dimension_numbers = #tpu.dot_dimension_numbers<[1], [0], [0], [1], [0, 0, 1, 1], [], []>} : vector<8x128xbf16>, vector<128x128xbf16>, vector<8x128xf32> -> vector<8x128xf32>
    %c0_14 = arith.constant 0 : index
    %c256 = arith.constant 256 : index
    %20 = vector.load %arg7[%c0_14, %c256] : memref<1x640xf32, #tpu.memory_space<vmem>>, vector<1x128xf32>
    %21 = vector.broadcast %20 : vector<1x128xf32> to vector<8x128xf32>
    %22 = arith.addf %19, %21 : vector<8x128xf32>
    %cst_15 = arith.constant 0.000000e+00 : f32
    %23 = vector.broadcast %cst_15 : f32 to vector<8x128xf32>
    %24 = arith.maximumf %22, %23 : vector<8x128xf32>
    %25 = arith.truncf %24 : vector<8x128xf32> to vector<8x128xbf16>
    %c0_16 = arith.constant 0 : index
    %c0_17 = arith.constant 0 : index
    %26 = vector.load %arg5[%c0_16, %c0_17] : memref<128x128xbf16, #tpu.memory_space<vmem>>, vector<128x128xbf16>
    %cst_18 = arith.constant dense<0.000000e+00> : vector<8x128xf32>
    %27 = tpu.matmul %25, %26, %cst_18 {dimension_numbers = #tpu.dot_dimension_numbers<[1], [0], [0], [1], [0, 0, 1, 1], [], []>} : vector<8x128xbf16>, vector<128x128xbf16>, vector<8x128xf32> -> vector<8x128xf32>
    %c0_19 = arith.constant 0 : index
    %c384 = arith.constant 384 : index
    %28 = vector.load %arg7[%c0_19, %c384] : memref<1x640xf32, #tpu.memory_space<vmem>>, vector<1x128xf32>
    %29 = vector.broadcast %28 : vector<1x128xf32> to vector<8x128xf32>
    %30 = arith.addf %27, %29 : vector<8x128xf32>
    %cst_20 = arith.constant 0.000000e+00 : f32
    %31 = vector.broadcast %cst_20 : f32 to vector<8x128xf32>
    %32 = arith.maximumf %30, %31 : vector<8x128xf32>
    %33 = arith.truncf %32 : vector<8x128xf32> to vector<8x128xbf16>
    %c0_21 = arith.constant 0 : index
    %c0_22 = arith.constant 0 : index
    %34 = vector.load %arg6[%c0_21, %c0_22] : memref<128x128xbf16, #tpu.memory_space<vmem>>, vector<128x128xbf16>
    %cst_23 = arith.constant dense<0.000000e+00> : vector<8x128xf32>
    %35 = tpu.matmul %33, %34, %cst_23 {dimension_numbers = #tpu.dot_dimension_numbers<[1], [0], [0], [1], [0, 0, 1, 1], [], []>} : vector<8x128xbf16>, vector<128x128xbf16>, vector<8x128xf32> -> vector<8x128xf32>
    %c0_24 = arith.constant 0 : index
    %c512 = arith.constant 512 : index
    %36 = vector.load %arg7[%c0_24, %c512] : memref<1x640xf32, #tpu.memory_space<vmem>>, vector<1x128xf32>
    %37 = vector.broadcast %36 : vector<1x128xf32> to vector<8x128xf32>
    %38 = arith.addf %35, %37 : vector<8x128xf32>
    %c0_25 = arith.constant 0 : index
    %c0_26 = arith.constant 0 : index
    %39 = vector.load %arg8[%c0_25, %c0_26] : memref<8x128xf32, #tpu.memory_space<vmem>>, vector<8x128xf32>
    tpu.vector_store %arg8[%c0_25, %c0_26], %38 {strides = array<i32>} : memref<8x128xf32, #tpu.memory_space<vmem>>, vector<8x128xf32>,
    return
  }
  func.func @transform_0(%arg0: i32) -> (i32, i32) {
    %c0_i32 = arith.constant 0 : i32
    %c0_i32_0 = arith.constant 0 : i32
    return %arg0, %c0_i32 : i32, i32
  }
  func.func @transform_1(%arg0: i32) -> (i32, i32) {
    %c0_i32 = arith.constant 0 : i32
    %c0_i32_0 = arith.constant 0 : i32
    %c0_i32_1 = arith.constant 0 : i32
    return %c0_i32, %c0_i32_0 : i32, i32
  }
  func.func @transform_2(%arg0: i32) -> (i32, i32) {
    %c0_i32 = arith.constant 0 : i32
    %c0_i32_0 = arith.constant 0 : i32
    %c0_i32_1 = arith.constant 0 : i32
    return %c0_i32, %c0_i32_0 : i32, i32
  }
  func.func @transform_3(%arg0: i32) -> (i32, i32) {
    %c0_i32 = arith.constant 0 : i32
    %c0_i32_0 = arith.constant 0 : i32
    %c0_i32_1 = arith.constant 0 : i32
    return %c0_i32, %c0_i32_0 : i32, i32
  }
  func.func @transform_4(%arg0: i32) -> (i32, i32) {
    %c0_i32 = arith.constant 0 : i32
    %c0_i32_0 = arith.constant 0 : i32
    %c0_i32_1 = arith.constant 0 : i32
    return %c0_i32, %c0_i32_0 : i32, i32
  }
  func.func @transform_5(%arg0: i32) -> (i32, i32) {
    %c0_i32 = arith.constant 0 : i32
    %c0_i32_0 = arith.constant 0 : i32
    %c0_i32_1 = arith.constant 0 : i32
    return %c0_i32, %c0_i32_0 : i32, i32
  }
  func.func @transform_6(%arg0: i32) -> (i32, i32) {
    %c0_i32 = arith.constant 0 : i32
    %c0_i32_0 = arith.constant 0 : i32
    %c0_i32_1 = arith.constant 0 : i32
    return %c0_i32, %c0_i32_0 : i32, i32
  }
  func.func @transform_7(%arg0: i32) -> (i32, i32) {
    %c0_i32 = arith.constant 0 : i32
    %c0_i32_0 = arith.constant 0 : i32
    return %arg0, %c0_i32 : i32, i32
  }
}

</mosaic_0001>

<llo_original>
// kernel: tpu_custom_call.1
$region0: #{tpu_custom_call.1}
  #allocation0 [shape = 'u32[]', space=smem, size = 0x4, offset = 0x4, fixed_abs, tag = 'smem constant byte address 0x4 - core index']
  #allocation1 [shape = 'u32[144,128]{1,0:T(1,128)}', space=vmem, size = 0x12000, scoped, tag = 'internal scratch']
  %s0 = inlined_call_operand.hbm [shape: f32[8,256], index: 0, kind: input, shape index: {}]
  %s1 = inlined_call_operand.hbm [shape: bf16[256,128], index: 1, kind: input, shape index: {}]
  %s2 = inlined_call_operand.hbm [shape: bf16[128,128], index: 2, kind: input, shape index: {}]
  %s3 = inlined_call_operand.hbm [shape: bf16[128,128], index: 3, kind: input, shape index: {}]
  %s4 = inlined_call_operand.hbm [shape: bf16[128,128], index: 4, kind: input, shape index: {}]
  %s5 = inlined_call_operand.hbm [shape: bf16[128,128], index: 5, kind: input, shape index: {}]
  %s6 = inlined_call_operand.vmem [shape: f32[1,640], index: 6, kind: input, shape index: {}]
  %s7 = inlined_call_operand.hbm [shape: f32[8,128], index: 7, kind: output, shape index: {}]
  %s8 = sld [smem:[#allocation0]]
  $region62: #{tpu_custom_call.1} parent=0
    _
  %s10 = ssub.s32 1, %s8
  %s11 = scalar_select 0, %s10, %s8
  $region1: #{tpu_custom_call.1} parent=0
    #allocation2 [shape = 'u8[8192]{0}', space=vmem, size = 0x2000, scoped, tag = 'input window, operand 0, single buffered']
    #allocation3 [shape = 's32[1]{0}', space=sflag, size = 0x4, scoped, tag = 'scoped memory for tpu_custom_call.1']
    #allocation4 [shape = 's32[1]{0}', space=sflag, size = 0x4, scoped, tag = 'scoped memory for tpu_custom_call.1']
    #allocation5 [shape = 'u8[65536]{0}', space=vmem, size = 0x10000, scoped, tag = 'input window, operand 1, single buffered']
    #allocation6 [shape = 's32[1]{0}', space=sflag, size = 0x4, scoped, tag = 'scoped memory for tpu_custom_call.1']
    #allocation7 [shape = 'u8[32768]{0}', space=vmem, size = 0x8000, scoped, tag = 'input window, operand 2, single buffered']
    #allocation8 [shape = 'u8[32768]{0}', space=vmem, size = 0x8000, scoped, tag = 'input window, operand 3, single buffered']
    #allocation9 [shape = 's32[1]{0}', space=sflag, size = 0x4, scoped, tag = 'scoped memory for tpu_custom_call.1']
    #allocation10 [shape = 'u8[32768]{0}', space=vmem, size = 0x8000, scoped, tag = 'input window, operand 4, single buffered']
    #allocation11 [shape = 'u8[32768]{0}', space=vmem, size = 0x8000, scoped, tag = 'input window, operand 5, single buffered']
    #allocation12 [shape = 's32[1]{0}', space=sflag, size = 0x4, scoped, tag = 'scoped memory for tpu_custom_call.1']
    #allocation13 [shape = 'u8[4096]{0}', space=vmem, size = 0x1000, scoped, tag = 'output window, operand 0, single buffered']
    %12 = vsyncpa [#allocation3], 0
    %13 = vsyncpa [#allocation6], 0
    %14 = vsyncpa [#allocation9], 0
    %15 = vsyncpa [#allocation12], 0
    %16 = vsyncpa [#allocation4], 0
    // Predicated region
    $region2: #{tpu_custom_call.1} parent=1 // pred_check
      _
    $region3: #{tpu_custom_call.1} parent=1 // pred_check_branch
      %18 = sbr.rel (0) target = $region5
    $region4: #{tpu_custom_call.1} parent=1 // pred_region
      %s20 = ssub.s32 256, 256
      %21 = vsyncadd [#allocation3], %s20
      %s23 = sshll.u32 [#allocation2], 4
      %s24 = int_to_ptr.vmem [resolvable:$true] %s23
      %26 = dma.hbm_to_vmem [thread:$0]  %s0, 256, %s24, [#allocation3]
    $region5: #{tpu_custom_call.1} parent=1 // pred_fallthru
      _
    // Predicated region
    $region6: #{tpu_custom_call.1} parent=1 // pred_check
      _
    $region7: #{tpu_custom_call.1} parent=1 // pred_check_branch
      %28 = sbr.rel (0) target = $region9
    $region8: #{tpu_custom_call.1} parent=1 // pred_region
      %s30 = ssub.s32 2048, 2048
      %31 = vsyncadd [#allocation6], %s30
      %s32 = sshll.u32 [#allocation5], 4
      %s33 = int_to_ptr.vmem [resolvable:$true] %s32
      %38 = dma.hbm_to_vmem [thread:$0]  %s1, 2048, %s33, [#allocation6], 64, 64, 4
    $region9: #{tpu_custom_call.1} parent=1 // pred_fallthru
      _
    // Predicated region
    $region10: #{tpu_custom_call.1} parent=1 // pred_check
      _
    $region11: #{tpu_custom_call.1} parent=1 // pred_check_branch
      %40 = sbr.rel (0) target = $region13
    $region12: #{tpu_custom_call.1} parent=1 // pred_region
      %s42 = ssub.s32 1024, 1024
      %43 = vsyncadd [#allocation6], %s42
      %s44 = sshll.u32 [#allocation7], 4
      %s45 = int_to_ptr.vmem [resolvable:$true] %s44
      %50 = dma.hbm_to_vmem [thread:$0]  %s2, 1024, %s45, [#allocation6], 64, 64, 4
    $region13: #{tpu_custom_call.1} parent=1 // pred_fallthru
      _
    // Predicated region
    $region14: #{tpu_custom_call.1} parent=1 // pred_check
      _
    $region15: #{tpu_custom_call.1} parent=1 // pred_check_branch
      %52 = sbr.rel (0) target = $region17
    $region16: #{tpu_custom_call.1} parent=1 // pred_region
      %s54 = ssub.s32 1024, 1024
      %55 = vsyncadd [#allocation9], %s54
      %s56 = sshll.u32 [#allocation8], 4
      %s57 = int_to_ptr.vmem [resolvable:$true] %s56
      %62 = dma.hbm_to_vmem [thread:$0]  %s3, 1024, %s57, [#allocation9], 64, 64, 4
    $region17: #{tpu_custom_call.1} parent=1 // pred_fallthru
      _
    // Predicated region
    $region18: #{tpu_custom_call.1} parent=1 // pred_check
      _
    $region19: #{tpu_custom_call.1} parent=1 // pred_check_branch
      %64 = sbr.rel (0) target = $region21
    $region20: #{tpu_custom_call.1} parent=1 // pred_region
      %s66 = ssub.s32 1024, 1024
      %67 = vsyncadd [#allocation9], %s66
      %s68 = sshll.u32 [#allocation10], 4
      %s69 = int_to_ptr.vmem [resolvable:$true] %s68
      %74 = dma.hbm_to_vmem [thread:$0]  %s4, 1024, %s69, [#allocation9], 64, 64, 4
    $region21: #{tpu_custom_call.1} parent=1 // pred_fallthru
      _
    // Predicated region
    $region22: #{tpu_custom_call.1} parent=1 // pred_check
      _
    $region23: #{tpu_custom_call.1} parent=1 // pred_check_branch
      %76 = sbr.rel (0) target = $region25
    $region24: #{tpu_custom_call.1} parent=1 // pred_region
      %s78 = ssub.s32 1024, 1024
      %79 = vsyncadd [#allocation12], %s78
      %s80 = sshll.u32 [#allocation11], 4
      %s81 = int_to_ptr.vmem [resolvable:$true] %s80
      %86 = dma.hbm_to_vmem [thread:$0]  %s5, 1024, %s81, [#allocation12], 64, 64, 4
    $region25: #{tpu_custom_call.1} parent=1 // pred_fallthru
      _
    // Predicated region
    $region26: #{tpu_custom_call.1} parent=1 // pred_check
      _
    $region27: #{tpu_custom_call.1} parent=1 // pred_check_branch
      %88 = sbr.rel (0) target = $region29
    $region28: #{tpu_custom_call.1} parent=1 // pred_region
      _
    $region29: #{tpu_custom_call.1} parent=1 // pred_fallthru
      _
    // Predicated region
    $region30: #{tpu_custom_call.1} parent=1 // pred_check
      _
    $region31: #{tpu_custom_call.1} parent=1 // pred_check_branch
      %90 = sbr.rel (0) target = $region33
    $region32: #{tpu_custom_call.1} parent=1 // pred_region
      %91 = dma.done [#allocation3], 256
    $region33: #{tpu_custom_call.1} parent=1 // pred_fallthru
      _
    // Predicated region
    $region34: #{tpu_custom_call.1} parent=1 // pred_check
      _
    $region35: #{tpu_custom_call.1} parent=1 // pred_check_branch
      %93 = sbr.rel (0) target = $region37
    $region36: #{tpu_custom_call.1} parent=1 // pred_region
      %94 = dma.done [#allocation6], 2048
    $region37: #{tpu_custom_call.1} parent=1 // pred_fallthru
      _
    // Predicated region
    $region38: #{tpu_custom_call.1} parent=1 // pred_check
      _
    $region39: #{tpu_custom_call.1} parent=1 // pred_check_branch
      %96 = sbr.rel (0) target = $region41
    $region40: #{tpu_custom_call.1} parent=1 // pred_region
      %97 = dma.done [#allocation6], 1024
    $region41: #{tpu_custom_call.1} parent=1 // pred_fallthru
      _
    // Predicated region
    $region42: #{tpu_custom_call.1} parent=1 // pred_check
      _
    $region43: #{tpu_custom_call.1} parent=1 // pred_check_branch
      %99 = sbr.rel (0) target = $region45
    $region44: #{tpu_custom_call.1} parent=1 // pred_region
      %100 = dma.done [#allocation9], 1024
    $region45: #{tpu_custom_call.1} parent=1 // pred_fallthru
      _
    // Predicated region
    $region46: #{tpu_custom_call.1} parent=1 // pred_check
      _
    $region47: #{tpu_custom_call.1} parent=1 // pred_check_branch
      %102 = sbr.rel (0) target = $region49
    $region48: #{tpu_custom_call.1} parent=1 // pred_region
      %103 = dma.done [#allocation9], 1024
    $region49: #{tpu_custom_call.1} parent=1 // pred_fallthru
      _
    // Predicated region
    $region50: #{tpu_custom_call.1} parent=1 // pred_check
      _
    $region51: #{tpu_custom_call.1} parent=1 // pred_check_branch
      %105 = sbr.rel (0) target = $region53
    $region52: #{tpu_custom_call.1} parent=1 // pred_region
      %106 = dma.done [#allocation12], 1024
    $region53: #{tpu_custom_call.1} parent=1 // pred_fallthru
      _
    %v108 = vld [vmem:[#allocation2] sm:$0xff]
    %v109 = vld [vmem:[#allocation2 + $0x8] sm:$0xff]
    %v110 = vpack.c.bf16 %v108, %v108
    %v111 = vpack.c.bf16 %v109, %v109
    %v112 = vld [vmem:[#allocation5] sm:$0xf]
    %v113 = vld [vmem:[#allocation5 + $0x4] sm:$0xf]
    %v114 = vld [vmem:[#allocation5 + $0x8] sm:$0xf]
    %v115 = vld [vmem:[#allocation5 + $0xc] sm:$0xf]
    %v116 = vld [vmem:[#allocation5 + $0x10] sm:$0xf]
    %v117 = vld [vmem:[#allocation5 + $0x14] sm:$0xf]
    %v118 = vld [vmem:[#allocation5 + $0x18] sm:$0xf]
    %v119 = vld [vmem:[#allocation5 + $0x1c] sm:$0xf]
    %v120 = vld [vmem:[#allocation5 + $0x20] sm:$0xf]
    %v121 = vld [vmem:[#allocation5 + $0x24] sm:$0xf]
    %v122 = vld [vmem:[#allocation5 + $0x28] sm:$0xf]
    %v123 = vld [vmem:[#allocation5 + $0x2c] sm:$0xf]
    %v124 = vld [vmem:[#allocation5 + $0x30] sm:$0xf]
    %v125 = vld [vmem:[#allocation5 + $0x34] sm:$0xf]
    %v126 = vld [vmem:[#allocation5 + $0x38] sm:$0xf]
    %v127 = vld [vmem:[#allocation5 + $0x3c] sm:$0xf]
    %v128 = vld [vmem:[#allocation5 + $0x40] sm:$0xf]
    %v129 = vld [vmem:[#allocation5 + $0x44] sm:$0xf]
    %v130 = vld [vmem:[#allocation5 + $0x48] sm:$0xf]
    %v131 = vld [vmem:[#allocation5 + $0x4c] sm:$0xf]
    %v132 = vld [vmem:[#allocation5 + $0x50] sm:$0xf]
    %v133 = vld [vmem:[#allocation5 + $0x54] sm:$0xf]
    %v134 = vld [vmem:[#allocation5 + $0x58] sm:$0xf]
    %v135 = vld [vmem:[#allocation5 + $0x5c] sm:$0xf]
    %v136 = vld [vmem:[#allocation5 + $0x60] sm:$0xf]
    %v137 = vld [vmem:[#allocation5 + $0x64] sm:$0xf]
    %v138 = vld [vmem:[#allocation5 + $0x68] sm:$0xf]
    %v139 = vld [vmem:[#allocation5 + $0x6c] sm:$0xf]
    %v140 = vld [vmem:[#allocation5 + $0x70] sm:$0xf]
    %v141 = vld [vmem:[#allocation5 + $0x74] sm:$0xf]
    %v142 = vld [vmem:[#allocation5 + $0x78] sm:$0xf]
    %v143 = vld [vmem:[#allocation5 + $0x7c] sm:$0xf]
    %v144 = vld [vmem:[%s6] sm:$0x1]
    %v146 = vlaneseq
    %v147 = vshrl.u32 %v146, 7
    %v148 = vsub.s32 0, %v147
    %v149 = vrot.slane %v144, %v148
    %v183 = vunpack.c.l.b16 %v112
    %v184 = vunpack.c.l.b16 %v113
    %v185 = vunpack.c.l.b16 %v114
    %v186 = vunpack.c.l.b16 %v115
    %v187 = vunpack.c.l.b16 %v116
    %v188 = vunpack.c.l.b16 %v117
    %v189 = vunpack.c.l.b16 %v118
    %v190 = vunpack.c.l.b16 %v119
    %v191 = vunpack.c.l.b16 %v120
    %v192 = vunpack.c.l.b16 %v121
    %v193 = vunpack.c.l.b16 %v122
    %v194 = vunpack.c.l.b16 %v123
    %v195 = vunpack.c.l.b16 %v124
    %v196 = vunpack.c.l.b16 %v125
    %v197 = vunpack.c.l.b16 %v126
    %v198 = vunpack.c.l.b16 %v127
    %v199 = vunpack.c.l.b16 %v128
    %v200 = vunpack.c.l.b16 %v129
    %v201 = vunpack.c.l.b16 %v130
    %v202 = vunpack.c.l.b16 %v131
    %v203 = vunpack.c.l.b16 %v132
    %v204 = vunpack.c.l.b16 %v133
    %v205 = vunpack.c.l.b16 %v134
    %v206 = vunpack.c.l.b16 %v135
    %v207 = vunpack.c.l.b16 %v136
    %v208 = vunpack.c.l.b16 %v137
    %v209 = vunpack.c.l.b16 %v138
    %v210 = vunpack.c.l.b16 %v139
    %v211 = vunpack.c.l.b16 %v140
    %v212 = vunpack.c.l.b16 %v141
    %v213 = vunpack.c.l.b16 %v142
    %v214 = vunpack.c.l.b16 %v143
    %v215 = vpack.c.b16 %v184, %v183
    %v216 = vpack.c.b16 %v186, %v185
    %v217 = vpack.c.b16 %v188, %v187
    %v218 = vpack.c.b16 %v190, %v189
    %v219 = vpack.c.b16 %v192, %v191
    %v220 = vpack.c.b16 %v194, %v193
    %v221 = vpack.c.b16 %v196, %v195
    %v222 = vpack.c.b16 %v198, %v197
    %v223 = vpack.c.b16 %v200, %v199
    %v224 = vpack.c.b16 %v202, %v201
    %v225 = vpack.c.b16 %v204, %v203
    %v226 = vpack.c.b16 %v206, %v205
    %v227 = vpack.c.b16 %v208, %v207
    %v228 = vpack.c.b16 %v210, %v209
    %v229 = vpack.c.b16 %v212, %v211
    %v230 = vpack.c.b16 %v214, %v213
    %247 = vmatprep.subr.bf16.mxu0 0
    %248 = vmatpush1.bf16.msra.mxu0 %v215
    %249 = vmatprep.subr.bf16.mxu0 0
    %250 = vmatpush1.bf16.msra.mxu0 %v216
    %251 = vmatprep.subr.bf16.mxu0 0
    %252 = vmatpush1.bf16.msra.mxu0 %v217
    %253 = vmatprep.subr.bf16.mxu0 0
    %254 = vmatpush1.bf16.msra.mxu0 %v218
    %255 = vmatprep.subr.bf16.mxu0 0
    %256 = vmatpush1.bf16.msra.mxu0 %v219
    %257 = vmatprep.subr.bf16.mxu0 0
    %258 = vmatpush1.bf16.msra.mxu0 %v220
    %259 = vmatprep.subr.bf16.mxu0 0
    %260 = vmatpush1.bf16.msra.mxu0 %v221
    %261 = vmatprep.subr.bf16.mxu0 0
    %262 = vmatpush1.bf16.msra.mxu0 %v222
    %263 = vmatprep.subr.bf16.mxu0 0
    %264 = vmatpush1.bf16.msra.mxu0 %v223
    %265 = vmatprep.subr.bf16.mxu0 0
    %266 = vmatpush1.bf16.msra.mxu0 %v224
    %267 = vmatprep.subr.bf16.mxu0 0
    %268 = vmatpush1.bf16.msra.mxu0 %v225
    %269 = vmatprep.subr.bf16.mxu0 0
    %270 = vmatpush1.bf16.msra.mxu0 %v226
    %271 = vmatprep.subr.bf16.mxu0 0
    %272 = vmatpush1.bf16.msra.mxu0 %v227
    %273 = vmatprep.subr.bf16.mxu0 0
    %274 = vmatpush1.bf16.msra.mxu0 %v228
    %275 = vmatprep.subr.bf16.mxu0 0
    %276 = vmatpush1.bf16.msra.mxu0 %v229
    %277 = vmatprep.subr.bf16.mxu0 0
    %278 = vmatpush1.bf16.msra.mxu0 %v230
    %279 = vmatprep.mubr.bf16.mxu0 %v111
    %280 = vmatmul.mubr.bf16.gmra.mrb[0].mxu0 %v110
    %v281 = vpop.f32.mrb[0].mxu0
    %v282 = vadd.f32 %v149, %v281
    %v283 = vpop.f32.mrb[0].mxu0
    %v284 = vpop.f32.mrb[0].mxu0
    %v285 = vpop.f32.mrb[0].mxu0
    %286 = vdwg.mxu0
    %v287 = vmax.f32 %v282, 0.0
    %v288 = vpack.c.bf16 %v287, %v287
    %v289 = vld [vmem:[#allocation7] sm:$0xf]
    %v290 = vld [vmem:[#allocation7 + $0x4] sm:$0xf]
    %v291 = vld [vmem:[#allocation7 + $0x8] sm:$0xf]
    %v292 = vld [vmem:[#allocation7 + $0xc] sm:$0xf]
    %v293 = vld [vmem:[#allocation7 + $0x10] sm:$0xf]
    %v294 = vld [vmem:[#allocation7 + $0x14] sm:$0xf]
    %v295 = vld [vmem:[#allocation7 + $0x18] sm:$0xf]
    %v296 = vld [vmem:[#allocation7 + $0x1c] sm:$0xf]
    %v297 = vld [vmem:[#allocation7 + $0x20] sm:$0xf]
    %v298 = vld [vmem:[#allocation7 + $0x24] sm:$0xf]
    %v299 = vld [vmem:[#allocation7 + $0x28] sm:$0xf]
    %v300 = vld [vmem:[#allocation7 + $0x2c] sm:$0xf]
    %v301 = vld [vmem:[#allocation7 + $0x30] sm:$0xf]
    %v302 = vld [vmem:[#allocation7 + $0x34] sm:$0xf]
    %v303 = vld [vmem:[#allocation7 + $0x38] sm:$0xf]
    %v304 = vld [vmem:[#allocation7 + $0x3c] sm:$0xf]
    %v305 = vld [vmem:[%s6 + $0x1] sm:$0x1]
    %v307 = vlaneseq
    %v308 = vshrl.u32 %v307, 7
    %v309 = vsub.s32 0, %v308
    %v310 = vrot.slane %v305, %v309
    %v328 = vunpack.c.l.b16 %v289
    %v329 = vunpack.c.l.b16 %v290
    %v330 = vunpack.c.l.b16 %v291
    %v331 = vunpack.c.l.b16 %v292
    %v332 = vunpack.c.l.b16 %v293
    %v333 = vunpack.c.l.b16 %v294
    %v334 = vunpack.c.l.b16 %v295
    %v335 = vunpack.c.l.b16 %v296
    %v336 = vunpack.c.l.b16 %v297
    %v337 = vunpack.c.l.b16 %v298
    %v338 = vunpack.c.l.b16 %v299
    %v339 = vunpack.c.l.b16 %v300
    %v340 = vunpack.c.l.b16 %v301
    %v341 = vunpack.c.l.b16 %v302
    %v342 = vunpack.c.l.b16 %v303
    %v343 = vunpack.c.l.b16 %v304
    %v344 = vpack.c.b16 %v329, %v328
    %v345 = vpack.c.b16 %v331, %v330
    %v346 = vpack.c.b16 %v333, %v332
    %v347 = vpack.c.b16 %v335, %v334
    %v348 = vpack.c.b16 %v337, %v336
    %v349 = vpack.c.b16 %v339, %v338
    %v350 = vpack.c.b16 %v341, %v340
    %v351 = vpack.c.b16 %v343, %v342
    %360 = vmatprep.subr.bf16.mxu0 0
    %361 = vmatpush1.bf16.msra.mxu0 %v344
    %362 = vmatprep.subr.bf16.mxu0 0
    %363 = vmatpush1.bf16.msra.mxu0 %v345
    %364 = vmatprep.subr.bf16.mxu0 0
    %365 = vmatpush1.bf16.msra.mxu0 %v346
    %366 = vmatprep.subr.bf16.mxu0 0
    %367 = vmatpush1.bf16.msra.mxu0 %v347
    %368 = vmatprep.subr.bf16.mxu0 0
    %369 = vmatpush1.bf16.msra.mxu0 %v348
    %370 = vmatprep.subr.bf16.mxu0 0
    %371 = vmatpush1.bf16.msra.mxu0 %v349
    %372 = vmatprep.subr.bf16.mxu0 0
    %373 = vmatpush1.bf16.msra.mxu0 %v350
    %374 = vmatprep.subr.bf16.mxu0 0
    %375 = vmatpush1.bf16.msra.mxu0 %v351
    %376 = vmatprep.subr.bf16.mxu0 0
    %377 = vmatpush1.bf16.msra.mxu0 0
    %378 = vmatprep.subr.bf16.mxu0 0
    %379 = vmatpush1.bf16.msra.mxu0 0
    %380 = vmatprep.subr.bf16.mxu0 0
    %381 = vmatpush1.bf16.msra.mxu0 0
    %382 = vmatprep.subr.bf16.mxu0 0
    %383 = vmatpush1.bf16.msra.mxu0 0
    %384 = vmatprep.subr.bf16.mxu0 0
    %385 = vmatpush1.bf16.msra.mxu0 0
    %386 = vmatprep.subr.bf16.mxu0 0
    %387 = vmatpush1.bf16.msra.mxu0 0
    %388 = vmatprep.subr.bf16.mxu0 0
    %389 = vmatpush1.bf16.msra.mxu0 0
    %390 = vmatprep.subr.bf16.mxu0 0
    %391 = vmatpush1.bf16.msra.mxu0 0
    %392 = vmatprep.mubr.bf16.mxu0 0
    %393 = vmatmul.mubr.bf16.gmra.mrb[0].mxu0 %v288
    %v394 = vpop.f32.mrb[0].mxu0
    %v395 = vadd.f32 %v310, %v394
    %v396 = vpop.f32.mrb[0].mxu0
    %v397 = vpop.f32.mrb[0].mxu0
    %v398 = vpop.f32.mrb[0].mxu0
    %399 = vdwg.mxu0
    %v400 = vmax.f32 %v395, 0.0
    %v401 = vpack.c.bf16 %v400, %v400
    %v402 = vld [vmem:[#allocation8] sm:$0xf]
    %v403 = vld [vmem:[#allocation8 + $0x4] sm:$0xf]
    %v404 = vld [vmem:[#allocation8 + $0x8] sm:$0xf]
    %v405 = vld [vmem:[#allocation8 + $0xc] sm:$0xf]
    %v406 = vld [vmem:[#allocation8 + $0x10] sm:$0xf]
    %v407 = vld [vmem:[#allocation8 + $0x14] sm:$0xf]
    %v408 = vld [vmem:[#allocation8 + $0x18] sm:$0xf]
    %v409 = vld [vmem:[#allocation8 + $0x1c] sm:$0xf]
    %v410 = vld [vmem:[#allocation8 + $0x20] sm:$0xf]
    %v411 = vld [vmem:[#allocation8 + $0x24] sm:$0xf]
    %v412 = vld [vmem:[#allocation8 + $0x28] sm:$0xf]
    %v413 = vld [vmem:[#allocation8 + $0x2c] sm:$0xf]
    %v414 = vld [vmem:[#allocation8 + $0x30] sm:$0xf]
    %v415 = vld [vmem:[#allocation8 + $0x34] sm:$0xf]
    %v416 = vld [vmem:[#allocation8 + $0x38] sm:$0xf]
    %v417 = vld [vmem:[#allocation8 + $0x3c] sm:$0xf]
    %v418 = vld [vmem:[%s6 + $0x2] sm:$0x1]
    %v420 = vlaneseq
    %v421 = vshrl.u32 %v420, 7
    %v422 = vsub.s32 0, %v421
    %v423 = vrot.slane %v418, %v422
    %v441 = vunpack.c.l.b16 %v402
    %v442 = vunpack.c.l.b16 %v403
    %v443 = vunpack.c.l.b16 %v404
    %v444 = vunpack.c.l.b16 %v405
    %v445 = vunpack.c.l.b16 %v406
    %v446 = vunpack.c.l.b16 %v407
    %v447 = vunpack.c.l.b16 %v408
    %v448 = vunpack.c.l.b16 %v409
    %v449 = vunpack.c.l.b16 %v410
    %v450 = vunpack.c.l.b16 %v411
    %v451 = vunpack.c.l.b16 %v412
    %v452 = vunpack.c.l.b16 %v413
    %v453 = vunpack.c.l.b16 %v414
    %v454 = vunpack.c.l.b16 %v415
    %v455 = vunpack.c.l.b16 %v416
    %v456 = vunpack.c.l.b16 %v417
    %v457 = vpack.c.b16 %v442, %v441
    %v458 = vpack.c.b16 %v444, %v443
    %v459 = vpack.c.b16 %v446, %v445
    %v460 = vpack.c.b16 %v448, %v447
    %v461 = vpack.c.b16 %v450, %v449
    %v462 = vpack.c.b16 %v452, %v451
    %v463 = vpack.c.b16 %v454, %v453
    %v464 = vpack.c.b16 %v456, %v455
    %473 = vmatprep.subr.bf16.mxu0 0
    %474 = vmatpush1.bf16.msra.mxu0 %v457
    %475 = vmatprep.subr.bf16.mxu0 0
    %476 = vmatpush1.bf16.msra.mxu0 %v458
    %477 = vmatprep.subr.bf16.mxu0 0
    %478 = vmatpush1.bf16.msra.mxu0 %v459
    %479 = vmatprep.subr.bf16.mxu0 0
    %480 = vmatpush1.bf16.msra.mxu0 %v460
    %481 = vmatprep.subr.bf16.mxu0 0
    %482 = vmatpush1.bf16.msra.mxu0 %v461
    %483 = vmatprep.subr.bf16.mxu0 0
    %484 = vmatpush1.bf16.msra.mxu0 %v462
    %485 = vmatprep.subr.bf16.mxu0 0
    %486 = vmatpush1.bf16.msra.mxu0 %v463
    %487 = vmatprep.subr.bf16.mxu0 0
    %488 = vmatpush1.bf16.msra.mxu0 %v464
    %489 = vmatprep.subr.bf16.mxu0 0
    %490 = vmatpush1.bf16.msra.mxu0 0
    %491 = vmatprep.subr.bf16.mxu0 0
    %492 = vmatpush1.bf16.msra.mxu0 0
    %493 = vmatprep.subr.bf16.mxu0 0
    %494 = vmatpush1.bf16.msra.mxu0 0
    %495 = vmatprep.subr.bf16.mxu0 0
    %496 = vmatpush1.bf16.msra.mxu0 0
    %497 = vmatprep.subr.bf16.mxu0 0
    %498 = vmatpush1.bf16.msra.mxu0 0
    %499 = vmatprep.subr.bf16.mxu0 0
    %500 = vmatpush1.bf16.msra.mxu0 0
    %501 = vmatprep.subr.bf16.mxu0 0
    %502 = vmatpush1.bf16.msra.mxu0 0
    %503 = vmatprep.subr.bf16.mxu0 0
    %504 = vmatpush1.bf16.msra.mxu0 0
    %505 = vmatprep.mubr.bf16.mxu0 0
    %506 = vmatmul.mubr.bf16.gmra.mrb[0].mxu0 %v401
    %v507 = vpop.f32.mrb[0].mxu0
    %v508 = vadd.f32 %v423, %v507
    %v509 = vpop.f32.mrb[0].mxu0
    %v510 = vpop.f32.mrb[0].mxu0
    %v511 = vpop.f32.mrb[0].mxu0
    %512 = vdwg.mxu0
    %v513 = vmax.f32 %v508, 0.0
    %v514 = vpack.c.bf16 %v513, %v513
    %v515 = vld [vmem:[#allocation10] sm:$0xf]
    %v516 = vld [vmem:[#allocation10 + $0x4] sm:$0xf]
    %v517 = vld [vmem:[#allocation10 + $0x8] sm:$0xf]
    %v518 = vld [vmem:[#allocation10 + $0xc] sm:$0xf]
    %v519 = vld [vmem:[#allocation10 + $0x10] sm:$0xf]
    %v520 = vld [vmem:[#allocation10 + $0x14] sm:$0xf]
    %v521 = vld [vmem:[#allocation10 + $0x18] sm:$0xf]
    %v522 = vld [vmem:[#allocation10 + $0x1c] sm:$0xf]
    %v523 = vld [vmem:[#allocation10 + $0x20] sm:$0xf]
    %v524 = vld [vmem:[#allocation10 + $0x24] sm:$0xf]
    %v525 = vld [vmem:[#allocation10 + $0x28] sm:$0xf]
    %v526 = vld [vmem:[#allocation10 + $0x2c] sm:$0xf]
    %v527 = vld [vmem:[#allocation10 + $0x30] sm:$0xf]
    %v528 = vld [vmem:[#allocation10 + $0x34] sm:$0xf]
    %v529 = vld [vmem:[#allocation10 + $0x38] sm:$0xf]
    %v530 = vld [vmem:[#allocation10 + $0x3c] sm:$0xf]
    %v531 = vld [vmem:[%s6 + $0x3] sm:$0x1]
    %v533 = vlaneseq
    %v534 = vshrl.u32 %v533, 7
    %v535 = vsub.s32 0, %v534
    %v536 = vrot.slane %v531, %v535
    %v554 = vunpack.c.l.b16 %v515
    %v555 = vunpack.c.l.b16 %v516
    %v556 = vunpack.c.l.b16 %v517
    %v557 = vunpack.c.l.b16 %v518
    %v558 = vunpack.c.l.b16 %v519
    %v559 = vunpack.c.l.b16 %v520
    %v560 = vunpack.c.l.b16 %v521
    %v561 = vunpack.c.l.b16 %v522
    %v562 = vunpack.c.l.b16 %v523
    %v563 = vunpack.c.l.b16 %v524
    %v564 = vunpack.c.l.b16 %v525
    %v565 = vunpack.c.l.b16 %v526
    %v566 = vunpack.c.l.b16 %v527
    %v567 = vunpack.c.l.b16 %v528
    %v568 = vunpack.c.l.b16 %v529
    %v569 = vunpack.c.l.b16 %v530
    %v570 = vpack.c.b16 %v555, %v554
    %v571 = vpack.c.b16 %v557, %v556
    %v572 = vpack.c.b16 %v559, %v558
    %v573 = vpack.c.b16 %v561, %v560
    %v574 = vpack.c.b16 %v563, %v562
    %v575 = vpack.c.b16 %v565, %v564
    %v576 = vpack.c.b16 %v567, %v566
    %v577 = vpack.c.b16 %v569, %v568
    %586 = vmatprep.subr.bf16.mxu0 0
    %587 = vmatpush1.bf16.msra.mxu0 %v570
    %588 = vmatprep.subr.bf16.mxu0 0
    %589 = vmatpush1.bf16.msra.mxu0 %v571
    %590 = vmatprep.subr.bf16.mxu0 0
    %591 = vmatpush1.bf16.msra.mxu0 %v572
    %592 = vmatprep.subr.bf16.mxu0 0
    %593 = vmatpush1.bf16.msra.mxu0 %v573
    %594 = vmatprep.subr.bf16.mxu0 0
    %595 = vmatpush1.bf16.msra.mxu0 %v574
    %596 = vmatprep.subr.bf16.mxu0 0
    %597 = vmatpush1.bf16.msra.mxu0 %v575
    %598 = vmatprep.subr.bf16.mxu0 0
    %599 = vmatpush1.bf16.msra.mxu0 %v576
    %600 = vmatprep.subr.bf16.mxu0 0
    %601 = vmatpush1.bf16.msra.mxu0 %v577
    %602 = vmatprep.subr.bf16.mxu0 0
    %603 = vmatpush1.bf16.msra.mxu0 0
    %604 = vmatprep.subr.bf16.mxu0 0
    %605 = vmatpush1.bf16.msra.mxu0 0
    %606 = vmatprep.subr.bf16.mxu0 0
    %607 = vmatpush1.bf16.msra.mxu0 0
    %608 = vmatprep.subr.bf16.mxu0 0
    %609 = vmatpush1.bf16.msra.mxu0 0
    %610 = vmatprep.subr.bf16.mxu0 0
    %611 = vmatpush1.bf16.msra.mxu0 0
    %612 = vmatprep.subr.bf16.mxu0 0
    %613 = vmatpush1.bf16.msra.mxu0 0
    %614 = vmatprep.subr.bf16.mxu0 0
    %615 = vmatpush1.bf16.msra.mxu0 0
    %616 = vmatprep.subr.bf16.mxu0 0
    %617 = vmatpush1.bf16.msra.mxu0 0
    %618 = vmatprep.mubr.bf16.mxu0 0
    %619 = vmatmul.mubr.bf16.gmra.mrb[0].mxu0 %v514
    %v620 = vpop.f32.mrb[0].mxu0
    %v621 = vadd.f32 %v536, %v620
    %v622 = vpop.f32.mrb[0].mxu0
    %v623 = vpop.f32.mrb[0].mxu0
    %v624 = vpop.f32.mrb[0].mxu0
    %625 = vdwg.mxu0
    %v626 = vmax.f32 %v621, 0.0
    %v627 = vpack.c.bf16 %v626, %v626
    %v628 = vld [vmem:[#allocation11] sm:$0xf]
    %v629 = vld [vmem:[#allocation11 + $0x4] sm:$0xf]
    %v630 = vld [vmem:[#allocation11 + $0x8] sm:$0xf]
    %v631 = vld [vmem:[#allocation11 + $0xc] sm:$0xf]
    %v632 = vld [vmem:[#allocation11 + $0x10] sm:$0xf]
    %v633 = vld [vmem:[#allocation11 + $0x14] sm:$0xf]
    %v634 = vld [vmem:[#allocation11 + $0x18] sm:$0xf]
    %v635 = vld [vmem:[#allocation11 + $0x1c] sm:$0xf]
    %v636 = vld [vmem:[#allocation11 + $0x20] sm:$0xf]
    %v637 = vld [vmem:[#allocation11 + $0x24] sm:$0xf]
    %v638 = vld [vmem:[#allocation11 + $0x28] sm:$0xf]
    %v639 = vld [vmem:[#allocation11 + $0x2c] sm:$0xf]
    %v640 = vld [vmem:[#allocation11 + $0x30] sm:$0xf]
    %v641 = vld [vmem:[#allocation11 + $0x34] sm:$0xf]
    %v642 = vld [vmem:[#allocation11 + $0x38] sm:$0xf]
    %v643 = vld [vmem:[#allocation11 + $0x3c] sm:$0xf]
    %v644 = vld [vmem:[%s6 + $0x4] sm:$0x1]
    %v646 = vlaneseq
    %v647 = vshrl.u32 %v646, 7
    %v648 = vsub.s32 0, %v647
    %v649 = vrot.slane %v644, %v648
    %v667 = vunpack.c.l.b16 %v628
    %v668 = vunpack.c.l.b16 %v629
    %v669 = vunpack.c.l.b16 %v630
    %v670 = vunpack.c.l.b16 %v631
    %v671 = vunpack.c.l.b16 %v632
    %v672 = vunpack.c.l.b16 %v633
    %v673 = vunpack.c.l.b16 %v634
    %v674 = vunpack.c.l.b16 %v635
    %v675 = vunpack.c.l.b16 %v636
    %v676 = vunpack.c.l.b16 %v637
    %v677 = vunpack.c.l.b16 %v638
    %v678 = vunpack.c.l.b16 %v639
    %v679 = vunpack.c.l.b16 %v640
    %v680 = vunpack.c.l.b16 %v641
    %v681 = vunpack.c.l.b16 %v642
    %v682 = vunpack.c.l.b16 %v643
    %v683 = vpack.c.b16 %v668, %v667
    %v684 = vpack.c.b16 %v670, %v669
    %v685 = vpack.c.b16 %v672, %v671
    %v686 = vpack.c.b16 %v674, %v673
    %v687 = vpack.c.b16 %v676, %v675
    %v688 = vpack.c.b16 %v678, %v677
    %v689 = vpack.c.b16 %v680, %v679
    %v690 = vpack.c.b16 %v682, %v681
    %699 = vmatprep.subr.bf16.mxu0 0
    %700 = vmatpush1.bf16.msra.mxu0 %v683
    %701 = vmatprep.subr.bf16.mxu0 0
    %702 = vmatpush1.bf16.msra.mxu0 %v684
    %703 = vmatprep.subr.bf16.mxu0 0
    %704 = vmatpush1.bf16.msra.mxu0 %v685
    %705 = vmatprep.subr.bf16.mxu0 0
    %706 = vmatpush1.bf16.msra.mxu0 %v686
    %707 = vmatprep.subr.bf16.mxu0 0
    %708 = vmatpush1.bf16.msra.mxu0 %v687
    %709 = vmatprep.subr.bf16.mxu0 0
    %710 = vmatpush1.bf16.msra.mxu0 %v688
    %711 = vmatprep.subr.bf16.mxu0 0
    %712 = vmatpush1.bf16.msra.mxu0 %v689
    %713 = vmatprep.subr.bf16.mxu0 0
    %714 = vmatpush1.bf16.msra.mxu0 %v690
    %715 = vmatprep.subr.bf16.mxu0 0
    %716 = vmatpush1.bf16.msra.mxu0 0
    %717 = vmatprep.subr.bf16.mxu0 0
    %718 = vmatpush1.bf16.msra.mxu0 0
    %719 = vmatprep.subr.bf16.mxu0 0
    %720 = vmatpush1.bf16.msra.mxu0 0
    %721 = vmatprep.subr.bf16.mxu0 0
    %722 = vmatpush1.bf16.msra.mxu0 0
    %723 = vmatprep.subr.bf16.mxu0 0
    %724 = vmatpush1.bf16.msra.mxu0 0
    %725 = vmatprep.subr.bf16.mxu0 0
    %726 = vmatpush1.bf16.msra.mxu0 0
    %727 = vmatprep.subr.bf16.mxu0 0
    %728 = vmatpush1.bf16.msra.mxu0 0
    %729 = vmatprep.subr.bf16.mxu0 0
    %730 = vmatpush1.bf16.msra.mxu0 0
    %731 = vmatprep.mubr.bf16.mxu0 0
    %732 = vmatmul.mubr.bf16.gmra.mrb[0].mxu0 %v627
    %v733 = vpop.f32.mrb[0].mxu0
    %v734 = vadd.f32 %v649, %v733
    %v735 = vpop.f32.mrb[0].mxu0
    %v736 = vpop.f32.mrb[0].mxu0
    %v737 = vpop.f32.mrb[0].mxu0
    %738 = vdwg.mxu0
    %739 = vst [vmem:[#allocation13] sm:$0xff] %v734
    // Predicated region
    $region54: #{tpu_custom_call.1} parent=1 // pred_check
      _
    $region55: #{tpu_custom_call.1} parent=1 // pred_check_branch
      %741 = sbr.rel (0) target = $region57
    $region56: #{tpu_custom_call.1} parent=1 // pred_region
      %s743 = ssub.s32 128, 128
      %744 = vsyncadd [#allocation4], %s743
      %s746 = sshll.u32 [#allocation13], 4
      %s747 = int_to_ptr.vmem [resolvable:$true] %s746
      %749 = dma.vmem_to_hbm [thread:$0]  %s747, 128, %s7, [#allocation4]
    $region57: #{tpu_custom_call.1} parent=1 // pred_fallthru
      _
    // Predicated region
    $region58: #{tpu_custom_call.1} parent=1 // pred_check
      _
    $region59: #{tpu_custom_call.1} parent=1 // pred_check_branch
      %751 = sbr.rel (0) target = $region61
    $region60: #{tpu_custom_call.1} parent=1 // pred_region
      %752 = dma.done [#allocation4], 128
    $region61: #{tpu_custom_call.1} parent=1 // pred_fallthru
      _
    %753 = vsyncpa [#allocation3], 1
    %754 = vsyncpa [#allocation6], 1
    %755 = vsyncpa [#allocation9], 1
    %756 = vsyncpa [#allocation12], 1
    %757 = vsyncpa [#allocation4], 1

// kernel: tpu_custom_call.1
$region0: #{tpu_custom_call.1}
  #allocation0 [shape = 'u32[]', space=smem, size = 0x4, offset = 0x4, fixed_abs, tag = 'smem constant byte address 0x4 - core index']
  #allocation1 [shape = 'u32[144,128]{1,0:T(1,128)}', space=vmem, size = 0x12000, scoped, tag = 'internal scratch']
  %s0 = inlined_call_operand.hbm [shape: f32[8,256], index: 0, kind: input, shape index: {}]
  %s1 = inlined_call_operand.hbm [shape: bf16[256,128], index: 1, kind: input, shape index: {}]
  %s2 = inlined_call_operand.hbm [shape: bf16[128,128], index: 2, kind: input, shape index: {}]
  %s3 = inlined_call_operand.hbm [shape: bf16[128,128], index: 3, kind: input, shape index: {}]
  %s4 = inlined_call_operand.hbm [shape: bf16[128,128], index: 4, kind: input, shape index: {}]
  %s5 = inlined_call_operand.hbm [shape: bf16[128,128], index: 5, kind: input, shape index: {}]
  %s6 = inlined_call_operand.vmem [shape: f32[1,640], index: 6, kind: input, shape index: {}]
  %s7 = inlined_call_operand.hbm [shape: f32[8,128], index: 7, kind: output, shape index: {}]
  %s8 = sld [smem:[#allocation0]]
  $region62: #{tpu_custom_call.1} parent=0
    _
  %s10 = ssub.s32 1, %s8
  %s11 = scalar_select 0, %s10, %s8
  $region1: #{tpu_custom_call.1} parent=0
    #allocation2 [shape = 'u8[8192]{0}', space=vmem, size = 0x2000, scoped, tag = 'input window, operand 0, single buffered']
    #allocation3 [shape = 's32[1]{0}', space=sflag, size = 0x4, scoped, tag = 'scoped memory for tpu_custom_call.1']
    #allocation4 [shape = 's32[1]{0}', space=sflag, size = 0x4, scoped, tag = 'scoped memory for tpu_custom_call.1']
    #allocation5 [shape = 'u8[65536]{0}', space=vmem, size = 0x10000, scoped, tag = 'input window, operand 1, single buffered']
    #allocation6 [shape = 's32[1]{0}', space=sflag, size = 0x4, scoped, tag = 'scoped memory for tpu_custom_call.1']
    #allocation7 [shape = 'u8[32768]{0}', space=vmem, size = 0x8000, scoped, tag = 'input window, operand 2, single buffered']
    #allocation8 [shape = 'u8[32768]{0}', space=vmem, size = 0x8000, scoped, tag = 'input window, operand 3, single buffered']
    #allocation9 [shape = 's32[1]{0}', space=sflag, size = 0x4, scoped, tag = 'scoped memory for tpu_custom_call.1']
    #allocation10 [shape = 'u8[32768]{0}', space=vmem, size = 0x8000, scoped, tag = 'input window, operand 4, single buffered']
    #allocation11 [shape = 'u8[32768]{0}', space=vmem, size = 0x8000, scoped, tag = 'input window, operand 5, single buffered']
    #allocation12 [shape = 's32[1]{0}', space=sflag, size = 0x4, scoped, tag = 'scoped memory for tpu_custom_call.1']
    #allocation13 [shape = 'u8[4096]{0}', space=vmem, size = 0x1000, scoped, tag = 'output window, operand 0, single buffered']
    %12 = vsyncpa [#allocation3], 0
    %13 = vsyncpa [#allocation6], 0
    %14 = vsyncpa [#allocation9], 0
    %15 = vsyncpa [#allocation12], 0
    %16 = vsyncpa [#allocation4], 0
    // Predicated region
    $region2: #{tpu_custom_call.1} parent=1 // pred_check
      _
    $region3: #{tpu_custom_call.1} parent=1 // pred_check_branch
      %18 = sbr.rel (0) target = $region5
    $region4: #{tpu_custom_call.1} parent=1 // pred_region
      %s20 = ssub.s32 256, 256
      %21 = vsyncadd [#allocation3], %s20
      %s23 = sshll.u32 [#allocation2], 4
      %s24 = int_to_ptr.vmem [resolvable:$true] %s23
      %26 = dma.hbm_to_vmem [thread:$0]  %s0, 256, %s24, [#allocation3]
    $region5: #{tpu_custom_call.1} parent=1 // pred_fallthru
      _
    // Predicated region
    $region6: #{tpu_custom_call.1} parent=1 // pred_check
      _
    $region7: #{tpu_custom_call.1} parent=1 // pred_check_branch
      %28 = sbr.rel (0) target = $region9
    $region8: #{tpu_custom_call.1} parent=1 // pred_region
      %s30 = ssub.s32 2048, 2048
      %31 = vsyncadd [#allocation6], %s30
      %s32 = sshll.u32 [#allocation5], 4
      %s33 = int_to_ptr.vmem [resolvable:$true] %s32
      %38 = dma.hbm_to_vmem [thread:$0]  %s1, 2048, %s33, [#allocation6], 64, 64, 4
    $region9: #{tpu_custom_call.1} parent=1 // pred_fallthru
      _
    // Predicated region
    $region10: #{tpu_custom_call.1} parent=1 // pred_check
      _
    $region11: #{tpu_custom_call.1} parent=1 // pred_check_branch
      %40 = sbr.rel (0) target = $region13
    $region12: #{tpu_custom_call.1} parent=1 // pred_region
      %s42 = ssub.s32 1024, 1024
      %43 = vsyncadd [#allocation6], %s42
      %s44 = sshll.u32 [#allocation7], 4
      %s45 = int_to_ptr.vmem [resolvable:$true] %s44
      %50 = dma.hbm_to_vmem [thread:$0]  %s2, 1024, %s45, [#allocation6], 64, 64, 4
    $region13: #{tpu_custom_call.1} parent=1 // pred_fallthru
      _
    // Predicated region
    $region14: #{tpu_custom_call.1} parent=1 // pred_check
      _
    $region15: #{tpu_custom_call.1} parent=1 // pred_check_branch
      %52 = sbr.rel (0) target = $region17
    $region16: #{tpu_custom_call.1} parent=1 // pred_region
      %s54 = ssub.s32 1024, 1024
      %55 = vsyncadd [#allocation9], %s54
      %s56 = sshll.u32 [#allocation8], 4
      %s57 = int_to_ptr.vmem [resolvable:$true] %s56
      %62 = dma.hbm_to_vmem [thread:$0]  %s3, 1024, %s57, [#allocation9], 64, 64, 4
    $region17: #{tpu_custom_call.1} parent=1 // pred_fallthru
      _
    // Predicated region
    $region18: #{tpu_custom_call.1} parent=1 // pred_check
      _
    $region19: #{tpu_custom_call.1} parent=1 // pred_check_branch
      %64 = sbr.rel (0) target = $region21
    $region20: #{tpu_custom_call.1} parent=1 // pred_region
      %s66 = ssub.s32 1024, 1024
      %67 = vsyncadd [#allocation9], %s66
      %s68 = sshll.u32 [#allocation10], 4
      %s69 = int_to_ptr.vmem [resolvable:$true] %s68
      %74 = dma.hbm_to_vmem [thread:$0]  %s4, 1024, %s69, [#allocation9], 64, 64, 4
    $region21: #{tpu_custom_call.1} parent=1 // pred_fallthru
      _
    // Predicated region
    $region22: #{tpu_custom_call.1} parent=1 // pred_check
      _
    $region23: #{tpu_custom_call.1} parent=1 // pred_check_branch
      %76 = sbr.rel (0) target = $region25
    $region24: #{tpu_custom_call.1} parent=1 // pred_region
      %s78 = ssub.s32 1024, 1024
      %79 = vsyncadd [#allocation12], %s78
      %s80 = sshll.u32 [#allocation11], 4
      %s81 = int_to_ptr.vmem [resolvable:$true] %s80
      %86 = dma.hbm_to_vmem [thread:$0]  %s5, 1024, %s81, [#allocation12], 64, 64, 4
    $region25: #{tpu_custom_call.1} parent=1 // pred_fallthru
      _
    // Predicated region
    $region26: #{tpu_custom_call.1} parent=1 // pred_check
      _
    $region27: #{tpu_custom_call.1} parent=1 // pred_check_branch
      %88 = sbr.rel (0) target = $region29
    $region28: #{tpu_custom_call.1} parent=1 // pred_region
      _
    $region29: #{tpu_custom_call.1} parent=1 // pred_fallthru
      _
    // Predicated region
    $region30: #{tpu_custom_call.1} parent=1 // pred_check
      _
    $region31: #{tpu_custom_call.1} parent=1 // pred_check_branch
      %90 = sbr.rel (0) target = $region33
    $region32: #{tpu_custom_call.1} parent=1 // pred_region
      %91 = dma.done [#allocation3], 256
    $region33: #{tpu_custom_call.1} parent=1 // pred_fallthru
      _
    // Predicated region
    $region34: #{tpu_custom_call.1} parent=1 // pred_check
      _
    $region35: #{tpu_custom_call.1} parent=1 // pred_check_branch
      %93 = sbr.rel (0) target = $region37
    $region36: #{tpu_custom_call.1} parent=1 // pred_region
      %94 = dma.done [#allocation6], 2048
    $region37: #{tpu_custom_call.1} parent=1 // pred_fallthru
      _
    // Predicated region
    $region38: #{tpu_custom_call.1} parent=1 // pred_check
      _
    $region39: #{tpu_custom_call.1} parent=1 // pred_check_branch
      %96 = sbr.rel (0) target = $region41
    $region40: #{tpu_custom_call.1} parent=1 // pred_region
      %97 = dma.done [#allocation6], 1024
    $region41: #{tpu_custom_call.1} parent=1 // pred_fallthru
      _
    // Predicated region
    $region42: #{tpu_custom_call.1} parent=1 // pred_check
      _
    $region43: #{tpu_custom_call.1} parent=1 // pred_check_branch
      %99 = sbr.rel (0) target = $region45
    $region44: #{tpu_custom_call.1} parent=1 // pred_region
      %100 = dma.done [#allocation9], 1024
    $region45: #{tpu_custom_call.1} parent=1 // pred_fallthru
      _
    // Predicated region
    $region46: #{tpu_custom_call.1} parent=1 // pred_check
      _
    $region47: #{tpu_custom_call.1} parent=1 // pred_check_branch
      %102 = sbr.rel (0) target = $region49
    $region48: #{tpu_custom_call.1} parent=1 // pred_region
      %103 = dma.done [#allocation9], 1024
    $region49: #{tpu_custom_call.1} parent=1 // pred_fallthru
      _
    // Predicated region
    $region50: #{tpu_custom_call.1} parent=1 // pred_check
      _
    $region51: #{tpu_custom_call.1} parent=1 // pred_check_branch
      %105 = sbr.rel (0) target = $region53
    $region52: #{tpu_custom_call.1} parent=1 // pred_region
      %106 = dma.done [#allocation12], 1024
    $region53: #{tpu_custom_call.1} parent=1 // pred_fallthru
      _
    %v108 = vld [vmem:[#allocation2] sm:$0xff]
    %v109 = vld [vmem:[#allocation2 + $0x8] sm:$0xff]
    %v110 = vpack.c.bf16 %v108, %v108
    %v111 = vpack.c.bf16 %v109, %v109
    %v112 = vld [vmem:[#allocation5] sm:$0xf]
    %v113 = vld [vmem:[#allocation5 + $0x4] sm:$0xf]
    %v114 = vld [vmem:[#allocation5 + $0x8] sm:$0xf]
    %v115 = vld [vmem:[#allocation5 + $0xc] sm:$0xf]
    %v116 = vld [vmem:[#allocation5 + $0x10] sm:$0xf]
    %v117 = vld [vmem:[#allocation5 + $0x14] sm:$0xf]
    %v118 = vld [vmem:[#allocation5 + $0x18] sm:$0xf]
    %v119 = vld [vmem:[#allocation5 + $0x1c] sm:$0xf]
    %v120 = vld [vmem:[#allocation5 + $0x20] sm:$0xf]
    %v121 = vld [vmem:[#allocation5 + $0x24] sm:$0xf]
    %v122 = vld [vmem:[#allocation5 + $0x28] sm:$0xf]
    %v123 = vld [vmem:[#allocation5 + $0x2c] sm:$0xf]
    %v124 = vld [vmem:[#allocation5 + $0x30] sm:$0xf]
    %v125 = vld [vmem:[#allocation5 + $0x34] sm:$0xf]
    %v126 = vld [vmem:[#allocation5 + $0x38] sm:$0xf]
    %v127 = vld [vmem:[#allocation5 + $0x3c] sm:$0xf]
    %v128 = vld [vmem:[#allocation5 + $0x40] sm:$0xf]
    %v129 = vld [vmem:[#allocation5 + $0x44] sm:$0xf]
    %v130 = vld [vmem:[#allocation5 + $0x48] sm:$0xf]
    %v131 = vld [vmem:[#allocation5 + $0x4c] sm:$0xf]
    %v132 = vld [vmem:[#allocation5 + $0x50] sm:$0xf]
    %v133 = vld [vmem:[#allocation5 + $0x54] sm:$0xf]
    %v134 = vld [vmem:[#allocation5 + $0x58] sm:$0xf]
    %v135 = vld [vmem:[#allocation5 + $0x5c] sm:$0xf]
    %v136 = vld [vmem:[#allocation5 + $0x60] sm:$0xf]
    %v137 = vld [vmem:[#allocation5 + $0x64] sm:$0xf]
    %v138 = vld [vmem:[#allocation5 + $0x68] sm:$0xf]
    %v139 = vld [vmem:[#allocation5 + $0x6c] sm:$0xf]
    %v140 = vld [vmem:[#allocation5 + $0x70] sm:$0xf]
    %v141 = vld [vmem:[#allocation5 + $0x74] sm:$0xf]
    %v142 = vld [vmem:[#allocation5 + $0x78] sm:$0xf]
    %v143 = vld [vmem:[#allocation5 + $0x7c] sm:$0xf]
    %v144 = vld [vmem:[%s6] sm:$0x1]
    %v146 = vlaneseq
    %v147 = vshrl.u32 %v146, 7
    %v148 = vsub.s32 0, %v147
    %v149 = vrot.slane %v144, %v148
    %v183 = vunpack.c.l.b16 %v112
    %v184 = vunpack.c.l.b16 %v113
    %v185 = vunpack.c.l.b16 %v114
    %v186 = vunpack.c.l.b16 %v115
    %v187 = vunpack.c.l.b16 %v116
    %v188 = vunpack.c.l.b16 %v117
    %v189 = vunpack.c.l.b16 %v118
    %v190 = vunpack.c.l.b16 %v119
    %v191 = vunpack.c.l.b16 %v120
    %v192 = vunpack.c.l.b16 %v121
    %v193 = vunpack.c.l.b16 %v122
    %v194 = vunpack.c.l.b16 %v123
    %v195 = vunpack.c.l.b16 %v124
    %v196 = vunpack.c.l.b16 %v125
    %v197 = vunpack.c.l.b16 %v126
    %v198 = vunpack.c.l.b16 %v127
    %v199 = vunpack.c.l.b16 %v128
    %v200 = vunpack.c.l.b16 %v129
    %v201 = vunpack.c.l.b16 %v130
    %v202 = vunpack.c.l.b16 %v131
    %v203 = vunpack.c.l.b16 %v132
    %v204 = vunpack.c.l.b16 %v133
    %v205 = vunpack.c.l.b16 %v134
    %v206 = vunpack.c.l.b16 %v135
    %v207 = vunpack.c.l.b16 %v136
    %v208 = vunpack.c.l.b16 %v137
    %v209 = vunpack.c.l.b16 %v138
    %v210 = vunpack.c.l.b16 %v139
    %v211 = vunpack.c.l.b16 %v140
    %v212 = vunpack.c.l.b16 %v141
    %v213 = vunpack.c.l.b16 %v142
    %v214 = vunpack.c.l.b16 %v143
    %v215 = vpack.c.b16 %v184, %v183
    %v216 = vpack.c.b16 %v186, %v185
    %v217 = vpack.c.b16 %v188, %v187
    %v218 = vpack.c.b16 %v190, %v189
    %v219 = vpack.c.b16 %v192, %v191
    %v220 = vpack.c.b16 %v194, %v193
    %v221 = vpack.c.b16 %v196, %v195
    %v222 = vpack.c.b16 %v198, %v197
    %v223 = vpack.c.b16 %v200, %v199
    %v224 = vpack.c.b16 %v202, %v201
    %v225 = vpack.c.b16 %v204, %v203
    %v226 = vpack.c.b16 %v206, %v205
    %v227 = vpack.c.b16 %v208, %v207
    %v228 = vpack.c.b16 %v210, %v209
    %v229 = vpack.c.b16 %v212, %v211
    %v230 = vpack.c.b16 %v214, %v213
    %247 = vmatprep.subr.bf16.mxu0 0
    %248 = vmatpush1.bf16.msra.mxu0 %v215
    %249 = vmatprep.subr.bf16.mxu0 0
    %250 = vmatpush1.bf16.msra.mxu0 %v216
    %251 = vmatprep.subr.bf16.mxu0 0
    %252 = vmatpush1.bf16.msra.mxu0 %v217
    %253 = vmatprep.subr.bf16.mxu0 0
    %254 = vmatpush1.bf16.msra.mxu0 %v218
    %255 = vmatprep.subr.bf16.mxu0 0
    %256 = vmatpush1.bf16.msra.mxu0 %v219
    %257 = vmatprep.subr.bf16.mxu0 0
    %258 = vmatpush1.bf16.msra.mxu0 %v220
    %259 = vmatprep.subr.bf16.mxu0 0
    %260 = vmatpush1.bf16.msra.mxu0 %v221
    %261 = vmatprep.subr.bf16.mxu0 0
    %262 = vmatpush1.bf16.msra.mxu0 %v222
    %263 = vmatprep.subr.bf16.mxu0 0
    %264 = vmatpush1.bf16.msra.mxu0 %v223
    %265 = vmatprep.subr.bf16.mxu0 0
    %266 = vmatpush1.bf16.msra.mxu0 %v224
    %267 = vmatprep.subr.bf16.mxu0 0
    %268 = vmatpush1.bf16.msra.mxu0 %v225
    %269 = vmatprep.subr.bf16.mxu0 0
    %270 = vmatpush1.bf16.msra.mxu0 %v226
    %271 = vmatprep.subr.bf16.mxu0 0
    %272 = vmatpush1.bf16.msra.mxu0 %v227
    %273 = vmatprep.subr.bf16.mxu0 0
    %274 = vmatpush1.bf16.msra.mxu0 %v228
    %275 = vmatprep.subr.bf16.mxu0 0
    %276 = vmatpush1.bf16.msra.mxu0 %v229
    %277 = vmatprep.subr.bf16.mxu0 0
    %278 = vmatpush1.bf16.msra.mxu0 %v230
    %279 = vmatprep.mubr.bf16.mxu0 %v111
    %280 = vmatmul.mubr.bf16.gmra.mrb[0].mxu0 %v110
    %v281 = vpop.f32.mrb[0].mxu0
    %v282 = vadd.f32 %v149, %v281
    %v283 = vpop.f32.mrb[0].mxu0
    %v284 = vpop.f32.mrb[0].mxu0
    %v285 = vpop.f32.mrb[0].mxu0
    %286 = vdwg.mxu0
    %v287 = vmax.f32 %v282, 0.0
    %v288 = vpack.c.bf16 %v287, %v287
    %v289 = vld [vmem:[#allocation7] sm:$0xf]
    %v290 = vld [vmem:[#allocation7 + $0x4] sm:$0xf]
    %v291 = vld [vmem:[#allocation7 + $0x8] sm:$0xf]
    %v292 = vld [vmem:[#allocation7 + $0xc] sm:$0xf]
    %v293 = vld [vmem:[#allocation7 + $0x10] sm:$0xf]
    %v294 = vld [vmem:[#allocation7 + $0x14] sm:$0xf]
    %v295 = vld [vmem:[#allocation7 + $0x18] sm:$0xf]
    %v296 = vld [vmem:[#allocation7 + $0x1c] sm:$0xf]
    %v297 = vld [vmem:[#allocation7 + $0x20] sm:$0xf]
    %v298 = vld [vmem:[#allocation7 + $0x24] sm:$0xf]
    %v299 = vld [vmem:[#allocation7 + $0x28] sm:$0xf]
    %v300 = vld [vmem:[#allocation7 + $0x2c] sm:$0xf]
    %v301 = vld [vmem:[#allocation7 + $0x30] sm:$0xf]
    %v302 = vld [vmem:[#allocation7 + $0x34] sm:$0xf]
    %v303 = vld [vmem:[#allocation7 + $0x38] sm:$0xf]
    %v304 = vld [vmem:[#allocation7 + $0x3c] sm:$0xf]
    %v305 = vld [vmem:[%s6 + $0x1] sm:$0x1]
    %v307 = vlaneseq
    %v308 = vshrl.u32 %v307, 7
    %v309 = vsub.s32 0, %v308
    %v310 = vrot.slane %v305, %v309
    %v328 = vunpack.c.l.b16 %v289
    %v329 = vunpack.c.l.b16 %v290
    %v330 = vunpack.c.l.b16 %v291
    %v331 = vunpack.c.l.b16 %v292
    %v332 = vunpack.c.l.b16 %v293
    %v333 = vunpack.c.l.b16 %v294
    %v334 = vunpack.c.l.b16 %v295
    %v335 = vunpack.c.l.b16 %v296
    %v336 = vunpack.c.l.b16 %v297
    %v337 = vunpack.c.l.b16 %v298
    %v338 = vunpack.c.l.b16 %v299
    %v339 = vunpack.c.l.b16 %v300
    %v340 = vunpack.c.l.b16 %v301
    %v341 = vunpack.c.l.b16 %v302
    %v342 = vunpack.c.l.b16 %v303
    %v343 = vunpack.c.l.b16 %v304
    %v344 = vpack.c.b16 %v329, %v328
    %v345 = vpack.c.b16 %v331, %v330
    %v346 = vpack.c.b16 %v333, %v332
    %v347 = vpack.c.b16 %v335, %v334
    %v348 = vpack.c.b16 %v337, %v336
    %v349 = vpack.c.b16 %v339, %v338
    %v350 = vpack.c.b16 %v341, %v340
    %v351 = vpack.c.b16 %v343, %v342
    %360 = vmatprep.subr.bf16.mxu0 0
    %361 = vmatpush1.bf16.msra.mxu0 %v344
    %362 = vmatprep.subr.bf16.mxu0 0
    %363 = vmatpush1.bf16.msra.mxu0 %v345
    %364 = vmatprep.subr.bf16.mxu0 0
    %365 = vmatpush1.bf16.msra.mxu0 %v346
    %366 = vmatprep.subr.bf16.mxu0 0
    %367 = vmatpush1.bf16.msra.mxu0 %v347
    %368 = vmatprep.subr.bf16.mxu0 0
    %369 = vmatpush1.bf16.msra.mxu0 %v348
    %370 = vmatprep.subr.bf16.mxu0 0
    %371 = vmatpush1.bf16.msra.mxu0 %v349
    %372 = vmatprep.subr.bf16.mxu0 0
    %373 = vmatpush1.bf16.msra.mxu0 %v350
    %374 = vmatprep.subr.bf16.mxu0 0
    %375 = vmatpush1.bf16.msra.mxu0 %v351
    %376 = vmatprep.subr.bf16.mxu0 0
    %377 = vmatpush1.bf16.msra.mxu0 0
    %378 = vmatprep.subr.bf16.mxu0 0
    %379 = vmatpush1.bf16.msra.mxu0 0
    %380 = vmatprep.subr.bf16.mxu0 0
    %381 = vmatpush1.bf16.msra.mxu0 0
    %382 = vmatprep.subr.bf16.mxu0 0
    %383 = vmatpush1.bf16.msra.mxu0 0
    %384 = vmatprep.subr.bf16.mxu0 0
    %385 = vmatpush1.bf16.msra.mxu0 0
    %386 = vmatprep.subr.bf16.mxu0 0
    %387 = vmatpush1.bf16.msra.mxu0 0
    %388 = vmatprep.subr.bf16.mxu0 0
    %389 = vmatpush1.bf16.msra.mxu0 0
    %390 = vmatprep.subr.bf16.mxu0 0
    %391 = vmatpush1.bf16.msra.mxu0 0
    %392 = vmatprep.mubr.bf16.mxu0 0
    %393 = vmatmul.mubr.bf16.gmra.mrb[0].mxu0 %v288
    %v394 = vpop.f32.mrb[0].mxu0
    %v395 = vadd.f32 %v310, %v394
    %v396 = vpop.f32.mrb[0].mxu0
    %v397 = vpop.f32.mrb[0].mxu0
    %v398 = vpop.f32.mrb[0].mxu0
    %399 = vdwg.mxu0
    %v400 = vmax.f32 %v395, 0.0
    %v401 = vpack.c.bf16 %v400, %v400
    %v402 = vld [vmem:[#allocation8] sm:$0xf]
    %v403 = vld [vmem:[#allocation8 + $0x4] sm:$0xf]
    %v404 = vld [vmem:[#allocation8 + $0x8] sm:$0xf]
    %v405 = vld [vmem:[#allocation8 + $0xc] sm:$0xf]
    %v406 = vld [vmem:[#allocation8 + $0x10] sm:$0xf]
    %v407 = vld [vmem:[#allocation8 + $0x14] sm:$0xf]
    %v408 = vld [vmem:[#allocation8 + $0x18] sm:$0xf]
    %v409 = vld [vmem:[#allocation8 + $0x1c] sm:$0xf]
    %v410 = vld [vmem:[#allocation8 + $0x20] sm:$0xf]
    %v411 = vld [vmem:[#allocation8 + $0x24] sm:$0xf]
    %v412 = vld [vmem:[#allocation8 + $0x28] sm:$0xf]
    %v413 = vld [vmem:[#allocation8 + $0x2c] sm:$0xf]
    %v414 = vld [vmem:[#allocation8 + $0x30] sm:$0xf]
    %v415 = vld [vmem:[#allocation8 + $0x34] sm:$0xf]
    %v416 = vld [vmem:[#allocation8 + $0x38] sm:$0xf]
    %v417 = vld [vmem:[#allocation8 + $0x3c] sm:$0xf]
    %v418 = vld [vmem:[%s6 + $0x2] sm:$0x1]
    %v420 = vlaneseq
    %v421 = vshrl.u32 %v420, 7
    %v422 = vsub.s32 0, %v421
    %v423 = vrot.slane %v418, %v422
    %v441 = vunpack.c.l.b16 %v402
    %v442 = vunpack.c.l.b16 %v403
    %v443 = vunpack.c.l.b16 %v404
    %v444 = vunpack.c.l.b16 %v405
    %v445 = vunpack.c.l.b16 %v406
    %v446 = vunpack.c.l.b16 %v407
    %v447 = vunpack.c.l.b16 %v408
    %v448 = vunpack.c.l.b16 %v409
    %v449 = vunpack.c.l.b16 %v410
    %v450 = vunpack.c.l.b16 %v411
    %v451 = vunpack.c.l.b16 %v412
    %v452 = vunpack.c.l.b16 %v413
    %v453 = vunpack.c.l.b16 %v414
    %v454 = vunpack.c.l.b16 %v415
    %v455 = vunpack.c.l.b16 %v416
    %v456 = vunpack.c.l.b16 %v417
    %v457 = vpack.c.b16 %v442, %v441
    %v458 = vpack.c.b16 %v444, %v443
    %v459 = vpack.c.b16 %v446, %v445
    %v460 = vpack.c.b16 %v448, %v447
    %v461 = vpack.c.b16 %v450, %v449
    %v462 = vpack.c.b16 %v452, %v451
    %v463 = vpack.c.b16 %v454, %v453
    %v464 = vpack.c.b16 %v456, %v455
    %473 = vmatprep.subr.bf16.mxu0 0
    %474 = vmatpush1.bf16.msra.mxu0 %v457
    %475 = vmatprep.subr.bf16.mxu0 0
    %476 = vmatpush1.bf16.msra.mxu0 %v458
    %477 = vmatprep.subr.bf16.mxu0 0
    %478 = vmatpush1.bf16.msra.mxu0 %v459
    %479 = vmatprep.subr.bf16.mxu0 0
    %480 = vmatpush1.bf16.msra.mxu0 %v460
    %481 = vmatprep.subr.bf16.mxu0 0
    %482 = vmatpush1.bf16.msra.mxu0 %v461
    %483 = vmatprep.subr.bf16.mxu0 0
    %484 = vmatpush1.bf16.msra.mxu0 %v462
    %485 = vmatprep.subr.bf16.mxu0 0
    %486 = vmatpush1.bf16.msra.mxu0 %v463
    %487 = vmatprep.subr.bf16.mxu0 0
    %488 = vmatpush1.bf16.msra.mxu0 %v464
    %489 = vmatprep.subr.bf16.mxu0 0
    %490 = vmatpush1.bf16.msra.mxu0 0
    %491 = vmatprep.subr.bf16.mxu0 0
    %492 = vmatpush1.bf16.msra.mxu0 0
    %493 = vmatprep.subr.bf16.mxu0 0
    %494 = vmatpush1.bf16.msra.mxu0 0
    %495 = vmatprep.subr.bf16.mxu0 0
    %496 = vmatpush1.bf16.msra.mxu0 0
    %497 = vmatprep.subr.bf16.mxu0 0
    %498 = vmatpush1.bf16.msra.mxu0 0
    %499 = vmatprep.subr.bf16.mxu0 0
    %500 = vmatpush1.bf16.msra.mxu0 0
    %501 = vmatprep.subr.bf16.mxu0 0
    %502 = vmatpush1.bf16.msra.mxu0 0
    %503 = vmatprep.subr.bf16.mxu0 0
    %504 = vmatpush1.bf16.msra.mxu0 0
    %505 = vmatprep.mubr.bf16.mxu0 0
    %506 = vmatmul.mubr.bf16.gmra.mrb[0].mxu0 %v401
    %v507 = vpop.f32.mrb[0].mxu0
    %v508 = vadd.f32 %v423, %v507
    %v509 = vpop.f32.mrb[0].mxu0
    %v510 = vpop.f32.mrb[0].mxu0
    %v511 = vpop.f32.mrb[0].mxu0
    %512 = vdwg.mxu0
    %v513 = vmax.f32 %v508, 0.0
    %v514 = vpack.c.bf16 %v513, %v513
    %v515 = vld [vmem:[#allocation10] sm:$0xf]
    %v516 = vld [vmem:[#allocation10 + $0x4] sm:$0xf]
    %v517 = vld [vmem:[#allocation10 + $0x8] sm:$0xf]
    %v518 = vld [vmem:[#allocation10 + $0xc] sm:$0xf]
    %v519 = vld [vmem:[#allocation10 + $0x10] sm:$0xf]
    %v520 = vld [vmem:[#allocation10 + $0x14] sm:$0xf]
    %v521 = vld [vmem:[#allocation10 + $0x18] sm:$0xf]
    %v522 = vld [vmem:[#allocation10 + $0x1c] sm:$0xf]
    %v523 = vld [vmem:[#allocation10 + $0x20] sm:$0xf]
    %v524 = vld [vmem:[#allocation10 + $0x24] sm:$0xf]
    %v525 = vld [vmem:[#allocation10 + $0x28] sm:$0xf]
    %v526 = vld [vmem:[#allocation10 + $0x2c] sm:$0xf]
    %v527 = vld [vmem:[#allocation10 + $0x30] sm:$0xf]
    %v528 = vld [vmem:[#allocation10 + $0x34] sm:$0xf]
    %v529 = vld [vmem:[#allocation10 + $0x38] sm:$0xf]
    %v530 = vld [vmem:[#allocation10 + $0x3c] sm:$0xf]
    %v531 = vld [vmem:[%s6 + $0x3] sm:$0x1]
    %v533 = vlaneseq
    %v534 = vshrl.u32 %v533, 7
    %v535 = vsub.s32 0, %v534
    %v536 = vrot.slane %v531, %v535
    %v554 = vunpack.c.l.b16 %v515
    %v555 = vunpack.c.l.b16 %v516
    %v556 = vunpack.c.l.b16 %v517
    %v557 = vunpack.c.l.b16 %v518
    %v558 = vunpack.c.l.b16 %v519
    %v559 = vunpack.c.l.b16 %v520
    %v560 = vunpack.c.l.b16 %v521
    %v561 = vunpack.c.l.b16 %v522
    %v562 = vunpack.c.l.b16 %v523
    %v563 = vunpack.c.l.b16 %v524
    %v564 = vunpack.c.l.b16 %v525
    %v565 = vunpack.c.l.b16 %v526
    %v566 = vunpack.c.l.b16 %v527
    %v567 = vunpack.c.l.b16 %v528
    %v568 = vunpack.c.l.b16 %v529
    %v569 = vunpack.c.l.b16 %v530
    %v570 = vpack.c.b16 %v555, %v554
    %v571 = vpack.c.b16 %v557, %v556
    %v572 = vpack.c.b16 %v559, %v558
    %v573 = vpack.c.b16 %v561, %v560
    %v574 = vpack.c.b16 %v563, %v562
    %v575 = vpack.c.b16 %v565, %v564
    %v576 = vpack.c.b16 %v567, %v566
    %v577 = vpack.c.b16 %v569, %v568
    %586 = vmatprep.subr.bf16.mxu0 0
    %587 = vmatpush1.bf16.msra.mxu0 %v570
    %588 = vmatprep.subr.bf16.mxu0 0
    %589 = vmatpush1.bf16.msra.mxu0 %v571
    %590 = vmatprep.subr.bf16.mxu0 0
    %591 = vmatpush1.bf16.msra.mxu0 %v572
    %592 = vmatprep.subr.bf16.mxu0 0
    %593 = vmatpush1.bf16.msra.mxu0 %v573
    %594 = vmatprep.subr.bf16.mxu0 0
    %595 = vmatpush1.bf16.msra.mxu0 %v574
    %596 = vmatprep.subr.bf16.mxu0 0
    %597 = vmatpush1.bf16.msra.mxu0 %v575
    %598 = vmatprep.subr.bf16.mxu0 0
    %599 = vmatpush1.bf16.msra.mxu0 %v576
    %600 = vmatprep.subr.bf16.mxu0 0
    %601 = vmatpush1.bf16.msra.mxu0 %v577
    %602 = vmatprep.subr.bf16.mxu0 0
    %603 = vmatpush1.bf16.msra.mxu0 0
    %604 = vmatprep.subr.bf16.mxu0 0
    %605 = vmatpush1.bf16.msra.mxu0 0
    %606 = vmatprep.subr.bf16.mxu0 0
    %607 = vmatpush1.bf16.msra.mxu0 0
    %608 = vmatprep.subr.bf16.mxu0 0
    %609 = vmatpush1.bf16.msra.mxu0 0
    %610 = vmatprep.subr.bf16.mxu0 0
    %611 = vmatpush1.bf16.msra.mxu0 0
    %612 = vmatprep.subr.bf16.mxu0 0
    %613 = vmatpush1.bf16.msra.mxu0 0
    %614 = vmatprep.subr.bf16.mxu0 0
    %615 = vmatpush1.bf16.msra.mxu0 0
    %616 = vmatprep.subr.bf16.mxu0 0
    %617 = vmatpush1.bf16.msra.mxu0 0
    %618 = vmatprep.mubr.bf16.mxu0 0
    %619 = vmatmul.mubr.bf16.gmra.mrb[0].mxu0 %v514
    %v620 = vpop.f32.mrb[0].mxu0
    %v621 = vadd.f32 %v536, %v620
    %v622 = vpop.f32.mrb[0].mxu0
    %v623 = vpop.f32.mrb[0].mxu0
    %v624 = vpop.f32.mrb[0].mxu0
    %625 = vdwg.mxu0
    %v626 = vmax.f32 %v621, 0.0
    %v627 = vpack.c.bf16 %v626, %v626
    %v628 = vld [vmem:[#allocation11] sm:$0xf]
    %v629 = vld [vmem:[#allocation11 + $0x4] sm:$0xf]
    %v630 = vld [vmem:[#allocation11 + $0x8] sm:$0xf]
    %v631 = vld [vmem:[#allocation11 + $0xc] sm:$0xf]
    %v632 = vld [vmem:[#allocation11 + $0x10] sm:$0xf]
    %v633 = vld [vmem:[#allocation11 + $0x14] sm:$0xf]
    %v634 = vld [vmem:[#allocation11 + $0x18] sm:$0xf]
    %v635 = vld [vmem:[#allocation11 + $0x1c] sm:$0xf]
    %v636 = vld [vmem:[#allocation11 + $0x20] sm:$0xf]
    %v637 = vld [vmem:[#allocation11 + $0x24] sm:$0xf]
    %v638 = vld [vmem:[#allocation11 + $0x28] sm:$0xf]
    %v639 = vld [vmem:[#allocation11 + $0x2c] sm:$0xf]
    %v640 = vld [vmem:[#allocation11 + $0x30] sm:$0xf]
    %v641 = vld [vmem:[#allocation11 + $0x34] sm:$0xf]
    %v642 = vld [vmem:[#allocation11 + $0x38] sm:$0xf]
    %v643 = vld [vmem:[#allocation11 + $0x3c] sm:$0xf]
    %v644 = vld [vmem:[%s6 + $0x4] sm:$0x1]
    %v646 = vlaneseq
    %v647 = vshrl.u32 %v646, 7
    %v648 = vsub.s32 0, %v647
    %v649 = vrot.slane %v644, %v648
    %v667 = vunpack.c.l.b16 %v628
    %v668 = vunpack.c.l.b16 %v629
    %v669 = vunpack.c.l.b16 %v630
    %v670 = vunpack.c.l.b16 %v631
    %v671 = vunpack.c.l.b16 %v632
    %v672 = vunpack.c.l.b16 %v633
    %v673 = vunpack.c.l.b16 %v634
    %v674 = vunpack.c.l.b16 %v635
    %v675 = vunpack.c.l.b16 %v636
    %v676 = vunpack.c.l.b16 %v637
    %v677 = vunpack.c.l.b16 %v638
    %v678 = vunpack.c.l.b16 %v639
    %v679 = vunpack.c.l.b16 %v640
    %v680 = vunpack.c.l.b16 %v641
    %v681 = vunpack.c.l.b16 %v642
    %v682 = vunpack.c.l.b16 %v643
    %v683 = vpack.c.b16 %v668, %v667
    %v684 = vpack.c.b16 %v670, %v669
    %v685 = vpack.c.b16 %v672, %v671
    %v686 = vpack.c.b16 %v674, %v673
    %v687 = vpack.c.b16 %v676, %v675
    %v688 = vpack.c.b16 %v678, %v677
    %v689 = vpack.c.b16 %v680, %v679
    %v690 = vpack.c.b16 %v682, %v681
    %699 = vmatprep.subr.bf16.mxu0 0
    %700 = vmatpush1.bf16.msra.mxu0 %v683
    %701 = vmatprep.subr.bf16.mxu0 0
    %702 = vmatpush1.bf16.msra.mxu0 %v684
    %703 = vmatprep.subr.bf16.mxu0 0
    %704 = vmatpush1.bf16.msra.mxu0 %v685
    %705 = vmatprep.subr.bf16.mxu0 0
    %706 = vmatpush1.bf16.msra.mxu0 %v686
    %707 = vmatprep.subr.bf16.mxu0 0
    %708 = vmatpush1.bf16.msra.mxu0 %v687
    %709 = vmatprep.subr.bf16.mxu0 0
    %710 = vmatpush1.bf16.msra.mxu0 %v688
    %711 = vmatprep.subr.bf16.mxu0 0
    %712 = vmatpush1.bf16.msra.mxu0 %v689
    %713 = vmatprep.subr.bf16.mxu0 0
    %714 = vmatpush1.bf16.msra.mxu0 %v690
    %715 = vmatprep.subr.bf16.mxu0 0
    %716 = vmatpush1.bf16.msra.mxu0 0
    %717 = vmatprep.subr.bf16.mxu0 0
    %718 = vmatpush1.bf16.msra.mxu0 0
    %719 = vmatprep.subr.bf16.mxu0 0
    %720 = vmatpush1.bf16.msra.mxu0 0
    %721 = vmatprep.subr.bf16.mxu0 0
    %722 = vmatpush1.bf16.msra.mxu0 0
    %723 = vmatprep.subr.bf16.mxu0 0
    %724 = vmatpush1.bf16.msra.mxu0 0
    %725 = vmatprep.subr.bf16.mxu0 0
    %726 = vmatpush1.bf16.msra.mxu0 0
    %727 = vmatprep.subr.bf16.mxu0 0
    %728 = vmatpush1.bf16.msra.mxu0 0
    %729 = vmatprep.subr.bf16.mxu0 0
    %730 = vmatpush1.bf16.msra.mxu0 0
    %731 = vmatprep.mubr.bf16.mxu0 0
    %732 = vmatmul.mubr.bf16.gmra.mrb[0].mxu0 %v627
    %v733 = vpop.f32.mrb[0].mxu0
    %v734 = vadd.f32 %v649, %v733
    %v735 = vpop.f32.mrb[0].mxu0
    %v736 = vpop.f32.mrb[0].mxu0
    %v737 = vpop.f32.mrb[0].mxu0
    %738 = vdwg.mxu0
    %739 = vst [vmem:[#allocation13] sm:$0xff] %v734
    // Predicated region
    $region54: #{tpu_custom_call.1} parent=1 // pred_check
      _
    $region55: #{tpu_custom_call.1} parent=1 // pred_check_branch
      %741 = sbr.rel (0) target = $region57
    $region56: #{tpu_custom_call.1} parent=1 // pred_region
      %s743 = ssub.s32 128, 128
      %744 = vsyncadd [#allocation4], %s743
      %s746 = sshll.u32 [#allocation13], 4
      %s747 = int_to_ptr.vmem [resolvable:$true] %s746
      %749 = dma.vmem_to_hbm [thread:$0]  %s747, 128, %s7, [#allocation4]
    $region57: #{tpu_custom_call.1} parent=1 // pred_fallthru
      _
    // Predicated region
    $region58: #{tpu_custom_call.1} parent=1 // pred_check
      _
    $region59: #{tpu_custom_call.1} parent=1 // pred_check_branch
      %751 = sbr.rel (0) target = $region61
    $region60: #{tpu_custom_call.1} parent=1 // pred_region
      %752 = dma.done [#allocation4], 128
    $region61: #{tpu_custom_call.1} parent=1 // pred_fallthru
      _
    %753 = vsyncpa [#allocation3], 1
    %754 = vsyncpa [#allocation6], 1
    %755 = vsyncpa [#allocation9], 1
    %756 = vsyncpa [#allocation12], 1
    %757 = vsyncpa [#allocation4], 1

</llo_original>
